<compile_context>
chip_gen: v5e
topology: v5e:2x2
jax: 0.10.0
libtpu: 0.0.40
codegen_flags: <defaults>
</compile_context>

<pallas_src>
import jax
import jax.numpy as jnp
from jax.experimental import pallas as pl
from jax.experimental.pallas import tpu as pltpu


def _coattention_kernel(x1_ref, x2_ref, wt_ref,
                        cq_ref, cd_ref, ad_ref, aq_ref):
    x1 = x1_ref[0]          # [N1, D]
    d = x2_ref[0]           # [N2, D]

    # Q = x1 @ W^T (weight already transposed in the wrapper).
    q = jnp.dot(x1, wt_ref[...], preferred_element_type=jnp.float32)   # [N1, D]

    # L[i, j] = sum_c Q[i, c] * D[j, c]  (rhs-transposed matmul, flash-attn style).
    l = jax.lax.dot_general(q, d, (((1,), (1,)), ((), ())),
                            preferred_element_type=jnp.float32)        # [N1, N2]

    # A_D = softmax(L, dim=2)  -> normalize over N2 (lane axis).
    m_row = jnp.max(l, axis=1, keepdims=True)
    e_row = jnp.exp(l - m_row)
    a_d = e_row / jnp.sum(e_row, axis=1, keepdims=True)                # [N1, N2]

    # A_Q_ = softmax(L, dim=1) -> normalize over N1 (sublane axis).
    m_col = jnp.max(l, axis=0, keepdims=True)
    e_col = jnp.exp(l - m_col)
    a_q_ = e_col / jnp.sum(e_col, axis=0, keepdims=True)               # [N1, N2]

    # C_D = A_D^T @ Q  (== transpose(Q^T @ A_D))
    c_d = jnp.dot(a_d.T, q, preferred_element_type=jnp.float32)        # [N2, D]
    # C_Q = A_Q_ @ D   (== transpose(D^T @ A_Q))
    c_q = jnp.dot(a_q_, d, preferred_element_type=jnp.float32)         # [N1, D]

    cq_ref[0] = c_q.astype(cq_ref.dtype)
    cd_ref[0] = c_d.astype(cd_ref.dtype)
    ad_ref[0] = a_d.astype(ad_ref.dtype)
    aq_ref[0] = a_q_.T.astype(aq_ref.dtype)                            # [N2, N1]


def co_attention(x1, x2, node_mask, w_q):
    """x1: [B, N1, D], x2: [B, N2, D], w_q: [D, D] (torch Linear layout, y = x @ W^T).

    Returns (C_Q, C_D, A_D, A_Q) matching the PyTorch module.
    """
    # TODO(synk): node_mask is an argument of the PyTorch forward but is never
    # used there; it is accepted and ignored here for signature parity.
    del node_mask

    B, N1, D = x1.shape
    B2, N2, D2 = x2.shape
    assert B == B2 and D == D2, "x1/x2 batch and feature dims must match"
    assert D % 128 == 0, "feature dim must be lane-aligned (multiple of 128)"
    assert N1 % 8 == 0 and N2 % 8 == 0, "sequence lengths must be multiples of 8"

    wt = jnp.transpose(w_q)   # [D, D]; kernel computes x @ wt == x @ W^T

    w_spec = pl.BlockSpec((D, D), lambda b: (0, 0))   # VMEM-resident weight

    out = pl.pallas_call(
        _coattention_kernel,
        out_shape=(
            jax.ShapeDtypeStruct((B, N1, D), x1.dtype),      # C_Q
            jax.ShapeDtypeStruct((B, N2, D), x1.dtype),      # C_D
            jax.ShapeDtypeStruct((B, N1, N2), jnp.float32),  # A_D
            jax.ShapeDtypeStruct((B, N2, N1), jnp.float32),  # A_Q
        ),
        grid_spec=pltpu.PrefetchScalarGridSpec(
            num_scalar_prefetch=0,
            grid=(B,),
            in_specs=[
                pl.BlockSpec((1, N1, D), lambda b: (b, 0, 0)),   # x1
                pl.BlockSpec((1, N2, D), lambda b: (b, 0, 0)),   # x2
                w_spec,                                          # W_q^T
            ],
            out_specs=(
                pl.BlockSpec((1, N1, D), lambda b: (b, 0, 0)),   # C_Q
                pl.BlockSpec((1, N2, D), lambda b: (b, 0, 0)),   # C_D
                pl.BlockSpec((1, N1, N2), lambda b: (b, 0, 0)),  # A_D
                pl.BlockSpec((1, N2, N1), lambda b: (b, 0, 0)),  # A_Q
            ),
        ),
        compiler_params=pltpu.CompilerParams(
            dimension_semantics=("parallel",)),
    )(x1, x2, wt)

    return out  # (C_Q, C_D, A_D, A_Q)


def reference_forward(x1, x2, w_q):
    """Pure-JAX replication of the PyTorch CoAttention forward."""
    hp = jax.lax.Precision.HIGHEST
    q = jnp.einsum("bid,ed->bie", x1, w_q, precision=hp)          # x1 @ W^T
    l = jnp.einsum("bid,bjd->bij", q, x2, precision=hp)           # Q @ D^T
    a_d = jax.nn.softmax(l, axis=2)
    a_q_ = jax.nn.softmax(l, axis=1)
    a_q = jnp.transpose(a_q_, (0, 2, 1))
    c_d = jnp.einsum("bij,bid->bjd", a_d, q, precision=hp)        # (Q^T A_D)^T
    c_q = jnp.einsum("bij,bjd->bid", a_q_, x2, precision=hp)      # (D^T A_Q)^T
    return c_q, c_d, a_d, a_q


if __name__ == "__main__":
    B, N1, N2, D = 2, 16, 8, 512   # q_proj is hard-coded to 512 in the module

    key = jax.random.PRNGKey(0)
    k1, k2, kw = jax.random.split(key, 3)

    x1 = jax.random.normal(k1, (B, N1, D), dtype=jnp.float32)
    x2 = jax.random.normal(k2, (B, N2, D), dtype=jnp.float32)
    node_mask = jnp.ones((B, N1), dtype=jnp.float32)   # unused by the forward
    # torch Linear(512, 512, bias=False) default init: U(-1/sqrt(512), 1/sqrt(512))
    bound = 1.0 / jnp.sqrt(jnp.float32(D))
    w_q = jax.random.uniform(kw, (D, D), dtype=jnp.float32,
                             minval=-bound, maxval=bound)

    c_q, c_d, a_d, a_q = co_attention(x1, x2, node_mask, w_q)
    c_q = jax.block_until_ready(c_q)

    r_cq, r_cd, r_ad, r_aq = reference_forward(x1, x2, w_q)

    assert c_q.shape == (B, N1, D)
    assert c_d.shape == (B, N2, D)
    assert a_d.shape == (B, N1, N2)
    assert a_q.shape == (B, N2, N1)
    assert jnp.allclose(c_q, r_cq, atol=1e-3, rtol=1e-3)
    assert jnp.allclose(c_d, r_cd, atol=1e-3, rtol=1e-3)
    assert jnp.allclose(a_d, r_ad, atol=1e-3, rtol=1e-3)
    assert jnp.allclose(a_q, r_aq, atol=1e-3, rtol=1e-3)

    print("KERNEL_OK")
</pallas_src>

<mosaic_0001>
module attributes {stable_mosaic.version = 11 : i64} {
  func.func @_coattention_kernel(%arg0: i32, %arg1: memref<1x16x512xf32, #tpu.memory_space<vmem>>, %arg2: memref<1x8x512xf32, #tpu.memory_space<vmem>>, %arg3: memref<512x512xf32, #tpu.memory_space<vmem>>, %arg4: memref<1x16x512xf32, #tpu.memory_space<vmem>>, %arg5: memref<1x8x512xf32, #tpu.memory_space<vmem>>, %arg6: memref<1x16x8xf32, #tpu.memory_space<vmem>>, %arg7: memref<1x8x16xf32, #tpu.memory_space<vmem>>) attributes {dimension_semantics = [#tpu.dimension_semantics<parallel>], iteration_bounds = array<i64: 2>, scalar_prefetch = 0 : i64, scratch_operands = 0 : i64, tpu.core_type = #tpu.core_type<tc>, window_params = [{transform_indices = @transform_0, window_bounds = array<i64: 1, 16, 512>}, {transform_indices = @transform_1, window_bounds = array<i64: 1, 8, 512>}, {pipeline_mode = #tpu.pipeline_mode<synchronous>, transform_indices = @transform_2, window_bounds = array<i64: 512, 512>}, {transform_indices = @transform_3, window_bounds = array<i64: 1, 16, 512>}, {transform_indices = @transform_4, window_bounds = array<i64: 1, 8, 512>}, {transform_indices = @transform_5, window_bounds = array<i64: 1, 16, 8>}, {transform_indices = @transform_6, window_bounds = array<i64: 1, 8, 16>}]} {
    %c0 = arith.constant 0 : index
    %c0_0 = arith.constant 0 : index
    %c0_1 = arith.constant 0 : index
    %0 = vector.load %arg1[%c0, %c0_0, %c0_1] : memref<1x16x512xf32, #tpu.memory_space<vmem>>, vector<1x16x512xf32>
    %1 = vector.shape_cast %0 : vector<1x16x512xf32> to vector<16x512xf32>
    %c0_2 = arith.constant 0 : index
    %c0_3 = arith.constant 0 : index
    %c0_4 = arith.constant 0 : index
    %2 = vector.load %arg2[%c0_2, %c0_3, %c0_4] : memref<1x8x512xf32, #tpu.memory_space<vmem>>, vector<1x8x512xf32>
    %3 = vector.shape_cast %2 : vector<1x8x512xf32> to vector<8x512xf32>
    %c0_5 = arith.constant 0 : index
    %c0_6 = arith.constant 0 : index
    %4 = vector.load %arg3[%c0_5, %c0_6] : memref<512x512xf32, #tpu.memory_space<vmem>>, vector<512x512xf32>
    %cst = arith.constant dense<0.000000e+00> : vector<16x512xf32>
    %5 = tpu.matmul %1, %4, %cst {dimension_numbers = #tpu.dot_dimension_numbers<[1], [0], [0], [1], [0, 0, 1, 1], [], []>} : vector<16x512xf32>, vector<512x512xf32>, vector<16x512xf32> -> vector<16x512xf32>
    %cst_7 = arith.constant dense<0.000000e+00> : vector<16x8xf32>
    %6 = tpu.matmul %5, %3, %cst_7 {dimension_numbers = #tpu.dot_dimension_numbers<[1], [1], [0], [0], [0, 0, 1, 0], [], []>} : vector<16x512xf32>, vector<8x512xf32>, vector<16x8xf32> -> vector<16x8xf32>
    %cst_8 = arith.constant dense<0xFF800000> : vector<16xf32>
    %7 = vector.multi_reduction <maximumf>, %6, %cst_8 [1] : vector<16x8xf32> to vector<16xf32>
    %8 = vector.shape_cast %7 : vector<16xf32> to vector<16x1xf32>
    %9 = vector.broadcast %8 : vector<16x1xf32> to vector<16x8xf32>
    %10 = arith.subf %6, %9 : vector<16x8xf32>
    %11 = math.exp %10 : vector<16x8xf32>
    %cst_9 = arith.constant dense<0.000000e+00> : vector<16xf32>
    %12 = vector.multi_reduction <add>, %11, %cst_9 [1] : vector<16x8xf32> to vector<16xf32>
    %13 = vector.shape_cast %12 : vector<16xf32> to vector<16x1xf32>
    %14 = vector.broadcast %13 : vector<16x1xf32> to vector<16x8xf32>
    %15 = arith.divf %11, %14 : vector<16x8xf32>
    %cst_10 = arith.constant dense<0xFF800000> : vector<8xf32>
    %16 = vector.multi_reduction <maximumf>, %6, %cst_10 [0] : vector<16x8xf32> to vector<8xf32>
    %17 = vector.shape_cast %16 : vector<8xf32> to vector<1x8xf32>
    %18 = vector.broadcast %17 : vector<1x8xf32> to vector<16x8xf32>
    %19 = arith.subf %6, %18 : vector<16x8xf32>
    %20 = math.exp %19 : vector<16x8xf32>
    %cst_11 = arith.constant dense<0.000000e+00> : vector<8xf32>
    %21 = vector.multi_reduction <add>, %20, %cst_11 [0] : vector<16x8xf32> to vector<8xf32>
    %22 = vector.shape_cast %21 : vector<8xf32> to vector<1x8xf32>
    %23 = vector.broadcast %22 : vector<1x8xf32> to vector<16x8xf32>
    %24 = arith.divf %20, %23 : vector<16x8xf32>
    %25 = tpu.transpose %15, [1, 0] : vector<16x8xf32> -> vector<8x16xf32>
    %cst_12 = arith.constant dense<0.000000e+00> : vector<8x512xf32>
    %26 = tpu.matmul %25, %5, %cst_12 {dimension_numbers = #tpu.dot_dimension_numbers<[1], [0], [0], [1], [0, 0, 1, 1], [], []>} : vector<8x16xf32>, vector<16x512xf32>, vector<8x512xf32> -> vector<8x512xf32>
    %cst_13 = arith.constant dense<0.000000e+00> : vector<16x512xf32>
    %27 = tpu.matmul %24, %3, %cst_13 {dimension_numbers = #tpu.dot_dimension_numbers<[1], [0], [0], [1], [0, 0, 1, 1], [], []>} : vector<16x8xf32>, vector<8x512xf32>, vector<16x512xf32> -> vector<16x512xf32>
    %c0_14 = arith.constant 0 : index
    %c0_15 = arith.constant 0 : index
    %c0_16 = arith.constant 0 : index
    %28 = vector.load %arg4[%c0_14, %c0_15, %c0_16] : memref<1x16x512xf32, #tpu.memory_space<vmem>>, vector<1x16x512xf32>
    %29 = vector.shape_cast %28 : vector<1x16x512xf32> to vector<16x512xf32>
    %30 = vector.shape_cast %27 : vector<16x512xf32> to vector<1x16x512xf32>
    tpu.vector_store %arg4[%c0_14, %c0_15, %c0_16], %30 {strides = array<i32>} : memref<1x16x512xf32, #tpu.memory_space<vmem>>, vector<1x16x512xf32>,
    %c0_17 = arith.constant 0 : index
    %c0_18 = arith.constant 0 : index
    %c0_19 = arith.constant 0 : index
    %31 = vector.load %arg5[%c0_17, %c0_18, %c0_19] : memref<1x8x512xf32, #tpu.memory_space<vmem>>, vector<1x8x512xf32>
    %32 = vector.shape_cast %31 : vector<1x8x512xf32> to vector<8x512xf32>
    %33 = vector.shape_cast %26 : vector<8x512xf32> to vector<1x8x512xf32>
    tpu.vector_store %arg5[%c0_17, %c0_18, %c0_19], %33 {strides = array<i32>} : memref<1x8x512xf32, #tpu.memory_space<vmem>>, vector<1x8x512xf32>,
    %c0_20 = arith.constant 0 : index
    %c0_21 = arith.constant 0 : index
    %c0_22 = arith.constant 0 : index
    %34 = vector.load %arg6[%c0_20, %c0_21, %c0_22] : memref<1x16x8xf32, #tpu.memory_space<vmem>>, vector<1x16x8xf32>
    %35 = vector.shape_cast %34 : vector<1x16x8xf32> to vector<16x8xf32>
    %36 = vector.shape_cast %15 : vector<16x8xf32> to vector<1x16x8xf32>
    tpu.vector_store %arg6[%c0_20, %c0_21, %c0_22], %36 {strides = array<i32>} : memref<1x16x8xf32, #tpu.memory_space<vmem>>, vector<1x16x8xf32>,
    %37 = tpu.transpose %24, [1, 0] : vector<16x8xf32> -> vector<8x16xf32>
    %c0_23 = arith.constant 0 : index
    %c0_24 = arith.constant 0 : index
    %c0_25 = arith.constant 0 : index
    %38 = vector.load %arg7[%c0_23, %c0_24, %c0_25] : memref<1x8x16xf32, #tpu.memory_space<vmem>>, vector<1x8x16xf32>
    %39 = vector.shape_cast %38 : vector<1x8x16xf32> to vector<8x16xf32>
    %40 = vector.shape_cast %37 : vector<8x16xf32> to vector<1x8x16xf32>
    tpu.vector_store %arg7[%c0_23, %c0_24, %c0_25], %40 {strides = array<i32>} : memref<1x8x16xf32, #tpu.memory_space<vmem>>, vector<1x8x16xf32>,
    return
  }
  func.func @transform_0(%arg0: i32) -> (i32, i32, i32) {
    %c0_i32 = arith.constant 0 : i32
    %c0_i32_0 = arith.constant 0 : i32
    %c0_i32_1 = arith.constant 0 : i32
    return %arg0, %c0_i32, %c0_i32_0 : i32, i32, i32
  }
  func.func @transform_1(%arg0: i32) -> (i32, i32, i32) {
    %c0_i32 = arith.constant 0 : i32
    %c0_i32_0 = arith.constant 0 : i32
    %c0_i32_1 = arith.constant 0 : i32
    return %arg0, %c0_i32, %c0_i32_0 : i32, i32, i32
  }
  func.func @transform_2(%arg0: i32) -> (i32, i32) {
    %c0_i32 = arith.constant 0 : i32
    %c0_i32_0 = arith.constant 0 : i32
    %c0_i32_1 = arith.constant 0 : i32
    return %c0_i32, %c0_i32_0 : i32, i32
  }
  func.func @transform_3(%arg0: i32) -> (i32, i32, i32) {
    %c0_i32 = arith.constant 0 : i32
    %c0_i32_0 = arith.constant 0 : i32
    %c0_i32_1 = arith.constant 0 : i32
    return %arg0, %c0_i32, %c0_i32_0 : i32, i32, i32
  }
  func.func @transform_4(%arg0: i32) -> (i32, i32, i32) {
    %c0_i32 = arith.constant 0 : i32
    %c0_i32_0 = arith.constant 0 : i32
    %c0_i32_1 = arith.constant 0 : i32
    return %arg0, %c0_i32, %c0_i32_0 : i32, i32, i32
  }
  func.func @transform_5(%arg0: i32) -> (i32, i32, i32) {
    %c0_i32 = arith.constant 0 : i32
    %c0_i32_0 = arith.constant 0 : i32
    %c0_i32_1 = arith.constant 0 : i32
    return %arg0, %c0_i32, %c0_i32_0 : i32, i32, i32
  }
  func.func @transform_6(%arg0: i32) -> (i32, i32, i32) {
    %c0_i32 = arith.constant 0 : i32
    %c0_i32_0 = arith.constant 0 : i32
    %c0_i32_1 = arith.constant 0 : i32
    return %arg0, %c0_i32, %c0_i32_0 : i32, i32, i32
  }
}

</mosaic_0001>

<llo_original>
// kernel: tpu_custom_call.1
$region0: #{tpu_custom_call.1}
  #allocation0 [shape = 'u32[]', space=smem, size = 0x4, offset = 0x4, fixed_abs, tag = 'smem constant byte address 0x4 - core index']
  #allocation1 [shape = 'u32[72,128]{1,0:T(1,128)}', space=vmem, size = 0x9000, scoped, tag = 'internal scratch']
  %s0 = inlined_call_operand.hbm [shape: f32[2,16,512], index: 0, kind: input, shape index: {}]
  %s1 = inlined_call_operand.hbm [shape: f32[2,8,512], index: 1, kind: input, shape index: {}]
  %s2 = inlined_call_operand.hbm [shape: f32[512,512], index: 2, kind: input, shape index: {}]
  %s3 = inlined_call_operand.hbm [shape: f32[2,16,512], index: 3, kind: output, shape index: {0}]
  %s4 = inlined_call_operand.hbm [shape: f32[2,8,512], index: 4, kind: output, shape index: {1}]
  %s5 = inlined_call_operand.vmem [shape: f32[2,16,8], index: 5, kind: output, shape index: {2}]
  %s6 = inlined_call_operand.hbm [shape: f32[2,8,16], index: 6, kind: output, shape index: {3}]
  %7 = xla_tuple %s3, %s4, %s5, %s6
  %s8 = sld [smem:[#allocation0]]
  $region81: #{tpu_custom_call.1} parent=0
    _
  %s10 = ssub.s32 1, %s8
  %s11 = scalar_select 0, %s10, %s8
  $region1: #{tpu_custom_call.1} parent=0
    #allocation2 [shape = 'u8[65536]{0}', space=vmem, size = 0x10000, scoped, tag = 'input window, operand 0']
    #allocation3 [shape = 's32[2]{0}', space=sflag, size = 0x8, scoped, tag = 'scoped memory for tpu_custom_call.1']
    #allocation4 [shape = 's32[2]{0}', space=sflag, size = 0x8, scoped, tag = 'scoped memory for tpu_custom_call.1']
    #allocation5 [shape = 'u8[32768]{0}', space=vmem, size = 0x8000, scoped, tag = 'input window, operand 1']
    #allocation6 [shape = 's32[2]{0}', space=sflag, size = 0x8, scoped, tag = 'scoped memory for tpu_custom_call.1']
    #allocation7 [shape = 'u8[1048576]{0}', space=vmem, size = 0x100000, scoped, tag = 'input window, operand 2, single buffered']
    #allocation8 [shape = 'u8[65536]{0}', space=vmem, size = 0x10000, scoped, tag = 'output window, operand 0']
    #allocation9 [shape = 'u8[32768]{0}', space=vmem, size = 0x8000, scoped, tag = 'output window, operand 1']
    #allocation10 [shape = 's32[2]{0}', space=sflag, size = 0x8, scoped, tag = 'scoped memory for tpu_custom_call.1']
    #allocation11 [shape = 'u8[8192]{0}', space=vmem, size = 0x2000, scoped, tag = 'output window, operand 3']
    %12 = vsyncpa [#allocation3], 0
    %s13 = scalar_lea.sflag [#allocation3], 1
    %14 = vsyncpa %s13, 0
    %15 = vsyncpa [#allocation6], 0
    %s16 = scalar_lea.sflag [#allocation6], 1
    %17 = vsyncpa %s16, 0
    %18 = vsyncpa [#allocation4], 0
    %s19 = scalar_lea.sflag [#allocation4], 1
    %20 = vsyncpa %s19, 0
    %21 = vsyncpa [#allocation10], 0
    %s22 = scalar_lea.sflag [#allocation10], 1
    %23 = vsyncpa %s22, 0
    loop: start=0, step=1, limit=4
    $region2: #{tpu_custom_call.1} parent=1 // loop_pre_header
      _
    $region3: #{tpu_custom_call.1} parent=1 // loop_header
      %s25 = sphi 0, %s29
      %p26 = scmp.ge.s32.totalorder %s25, 4
      %s35 = sphi 0, %s37
      %s38 = sphi 0, %s35
      %s39 = sphi 0, %s38
      %s55 = sphi 0, %s39
      %s61 = sphi 0, %s63
      %s64 = sphi 0, %s61
      %s65 = sphi 0, %s64
      %s81 = sphi 0, %s65
      %s85 = sphi 0, %s85
      %s87 = sphi 0, %s85
      %s88 = sphi 0, %s87
      %s102 = sphi 0, %s88
      %s108 = sphi 0, %s110
      %s111 = sphi 0, %s108
      %s112 = sphi 0, %s111
      %s128 = sphi 0, %s112
      %s134 = sphi 0, %s136
      %s137 = sphi 0, %s134
      %s138 = sphi 0, %s137
      %s154 = sphi 0, %s138
      %s160 = sphi 0, %s162
      %s163 = sphi 0, %s160
      %s164 = sphi 0, %s163
      %s180 = sphi 0, %s164
      %s186 = sphi 0, %s188
      %s189 = sphi 0, %s186
      %s190 = sphi 0, %s189
      %s206 = sphi 0, %s190
    $region4: #{tpu_custom_call.1} parent=1 // loop_header_branch
      %28 = sbr.rel (%p26) target = $region8
    $region5: #{tpu_custom_call.1} parent=1 // loop_body
      %s30 = ssub.s32 %s25, 1
      %s31 = ssub.s32 %s25, 2
      %s32 = sadd.s32 %s25, 1
      %s33 = ssub.s32 %s25, %s32
      %p34 = scmp.eq.s32.totalorder %s33, 0
      %s36 = sadd.s32 %s35, 1
      %s37 = scalar_select %p34, %s35, %s36
      %p40 = pneg %p34
      %p41 = scmp.eq.s32.totalorder %s25, 1
      %p42 = por %p40, %p41
      %p43 = scmp.ne.s32.totalorder %s35, %s38
      %p44 = scmp.eq.s32.totalorder %s25, 0
      %p45 = por %p43, %p44
      %p46 = scmp.ne.s32.totalorder %s35, %s38
      %p47 = scmp.eq.s32.totalorder %s30, 1
      %p48 = por %p46, %p47
      %p49 = scmp.ne.s32.totalorder %s38, %s39
      %p50 = scmp.eq.s32.totalorder %s30, 0
      %p51 = por %p49, %p50
      %p52 = scmp.ne.s32.totalorder %s38, %s39
      %p53 = scmp.eq.s32.totalorder %s31, 1
      %p54 = por %p52, %p53
      %p56 = scmp.ne.s32.totalorder %s39, %s55
      %p57 = scmp.eq.s32.totalorder %s31, 0
      %p58 = por %p56, %p57
      %s59 = ssub.s32 %s25, %s32
      %p60 = scmp.eq.s32.totalorder %s59, 0
      %s62 = sadd.s32 %s61, 1
      %s63 = scalar_select %p60, %s61, %s62
      %p66 = pneg %p60
      %p67 = scmp.eq.s32.totalorder %s25, 1
      %p68 = por %p66, %p67
      %p69 = scmp.ne.s32.totalorder %s61, %s64
      %p70 = scmp.eq.s32.totalorder %s25, 0
      %p71 = por %p69, %p70
      %p72 = scmp.ne.s32.totalorder %s61, %s64
      %p73 = scmp.eq.s32.totalorder %s30, 1
      %p74 = por %p72, %p73
      %p75 = scmp.ne.s32.totalorder %s64, %s65
      %p76 = scmp.eq.s32.totalorder %s30, 0
      %p77 = por %p75, %p76
      %p78 = scmp.ne.s32.totalorder %s64, %s65
      %p79 = scmp.eq.s32.totalorder %s31, 1
      %p80 = por %p78, %p79
      %p82 = scmp.ne.s32.totalorder %s65, %s81
      %p83 = scmp.eq.s32.totalorder %s31, 0
      %p84 = por %p82, %p83
      %s86 = sadd.s32 %s85, 1
      %p89 = scmp.eq.s32.totalorder %s25, 1
      %p90 = scmp.ne.s32.totalorder %s85, %s87
      %p91 = scmp.eq.s32.totalorder %s25, 0
      %p92 = por %p90, %p91
      %p93 = scmp.ne.s32.totalorder %s85, %s87
      %p94 = scmp.eq.s32.totalorder %s30, 1
      %p95 = por %p93, %p94
      %p96 = scmp.ne.s32.totalorder %s87, %s88
      %p97 = scmp.eq.s32.totalorder %s30, 0
      %p98 = por %p96, %p97
      %p99 = scmp.ne.s32.totalorder %s87, %s88
      %p100 = scmp.eq.s32.totalorder %s31, 1
      %p101 = por %p99, %p100
      %p103 = scmp.ne.s32.totalorder %s88, %s102
      %p104 = scmp.eq.s32.totalorder %s31, 0
      %p105 = por %p103, %p104
      %s106 = ssub.s32 %s25, %s32
      %p107 = scmp.eq.s32.totalorder %s106, 0
      %s109 = sadd.s32 %s108, 1
      %s110 = scalar_select %p107, %s108, %s109
      %p113 = pneg %p107
      %p114 = scmp.eq.s32.totalorder %s25, 1
      %p115 = por %p113, %p114
      %p116 = scmp.ne.s32.totalorder %s108, %s111
      %p117 = scmp.eq.s32.totalorder %s25, 0
      %p118 = por %p116, %p117
      %p119 = scmp.ne.s32.totalorder %s108, %s111
      %p120 = scmp.eq.s32.totalorder %s30, 1
      %p121 = por %p119, %p120
      %p122 = scmp.ne.s32.totalorder %s111, %s112
      %p123 = scmp.eq.s32.totalorder %s30, 0
      %p124 = por %p122, %p123
      %p125 = scmp.ne.s32.totalorder %s111, %s112
      %p126 = scmp.eq.s32.totalorder %s31, 1
      %p127 = por %p125, %p126
      %p129 = scmp.ne.s32.totalorder %s112, %s128
      %p130 = scmp.eq.s32.totalorder %s31, 0
      %p131 = por %p129, %p130
      %s132 = ssub.s32 %s25, %s32
      %p133 = scmp.eq.s32.totalorder %s132, 0
      %s135 = sadd.s32 %s134, 1
      %s136 = scalar_select %p133, %s134, %s135
      %p139 = pneg %p133
      %p140 = scmp.eq.s32.totalorder %s25, 1
      %p141 = por %p139, %p140
      %p142 = scmp.ne.s32.totalorder %s134, %s137
      %p143 = scmp.eq.s32.totalorder %s25, 0
      %p144 = por %p142, %p143
      %p145 = scmp.ne.s32.totalorder %s134, %s137
      %p146 = scmp.eq.s32.totalorder %s30, 1
      %p147 = por %p145, %p146
      %p148 = scmp.ne.s32.totalorder %s137, %s138
      %p149 = scmp.eq.s32.totalorder %s30, 0
      %p150 = por %p148, %p149
      %p151 = scmp.ne.s32.totalorder %s137, %s138
      %p152 = scmp.eq.s32.totalorder %s31, 1
      %p153 = por %p151, %p152
      %p155 = scmp.ne.s32.totalorder %s138, %s154
      %p156 = scmp.eq.s32.totalorder %s31, 0
      %p157 = por %p155, %p156
      %s158 = ssub.s32 %s25, %s32
      %p159 = scmp.eq.s32.totalorder %s158, 0
      %s161 = sadd.s32 %s160, 1
      %s162 = scalar_select %p159, %s160, %s161
      %p165 = pneg %p159
      %p166 = scmp.eq.s32.totalorder %s25, 1
      %p167 = por %p165, %p166
      %p168 = scmp.ne.s32.totalorder %s160, %s163
      %p169 = scmp.eq.s32.totalorder %s25, 0
      %p170 = por %p168, %p169
      %p171 = scmp.ne.s32.totalorder %s160, %s163
      %p172 = scmp.eq.s32.totalorder %s30, 1
      %p173 = por %p171, %p172
      %p174 = scmp.ne.s32.totalorder %s163, %s164
      %p175 = scmp.eq.s32.totalorder %s30, 0
      %p176 = por %p174, %p175
      %p177 = scmp.ne.s32.totalorder %s163, %s164
      %p178 = scmp.eq.s32.totalorder %s31, 1
      %p179 = por %p177, %p178
      %p181 = scmp.ne.s32.totalorder %s164, %s180
      %p182 = scmp.eq.s32.totalorder %s31, 0
      %p183 = por %p181, %p182
      %s184 = ssub.s32 %s25, %s32
      %p185 = scmp.eq.s32.totalorder %s184, 0
      %s187 = sadd.s32 %s186, 1
      %s188 = scalar_select %p185, %s186, %s187
      %p191 = pneg %p185
      %p192 = scmp.eq.s32.totalorder %s25, 1
      %p193 = por %p191, %p192
      %p194 = scmp.ne.s32.totalorder %s186, %s189
      %p195 = scmp.eq.s32.totalorder %s25, 0
      %p196 = por %p194, %p195
      %p197 = scmp.ne.s32.totalorder %s186, %s189
      %p198 = scmp.eq.s32.totalorder %s30, 1
      %p199 = por %p197, %p198
      %p200 = scmp.ne.s32.totalorder %s189, %s190
      %p201 = scmp.eq.s32.totalorder %s30, 0
      %p202 = por %p200, %p201
      %p203 = scmp.ne.s32.totalorder %s189, %s190
      %p204 = scmp.eq.s32.totalorder %s31, 1
      %p205 = por %p203, %p204
      %p207 = scmp.ne.s32.totalorder %s190, %s206
      %p208 = scmp.eq.s32.totalorder %s31, 0
      %p209 = por %p207, %p208
      %p210 = scmp.le.s32.totalorder 1, %s25
      %p211 = scmp.lt.s32.totalorder %s25, 3
      %p212 = pnand %p210, %p211
      %p213 = pneg %p212
      // Predicated region
      $region9: #{tpu_custom_call.1} parent=5 // pred_check
        _
      $region10: #{tpu_custom_call.1} parent=5 // pred_check_branch
        %215 = sbr.rel (%p212) target = $region12
      $region11: #{tpu_custom_call.1} parent=5 // pred_region
        %s216 = ssub.s32 %s25, 1
        // Predicated region
        $region13: #{tpu_custom_call.1} parent=11 // pred_check
          %p217 = pneg %p98
        $region14: #{tpu_custom_call.1} parent=11 // pred_check_branch
          %219 = sbr.rel (%p217) target = $region16
        $region15: #{tpu_custom_call.1} parent=11 // pred_region
          %221 = vsyncadd [#allocation6], 0
          %s222 = sshll.u32 %s2, 4
          %s223 = int_to_ptr.hbm [resolvable:$true] %s222
          %s224 = sshll.u32 [#allocation7], 4
          %s225 = int_to_ptr.vmem [resolvable:$true] %s224
          %230 = dma.hbm_to_vmem [thread:$0]  %s223, 32768, %s225, [#allocation6], 512, 512, 32
        $region16: #{tpu_custom_call.1} parent=11 // pred_fallthru
          _
      $region12: #{tpu_custom_call.1} parent=5 // pred_fallthru
        _
      %p231 = scmp.lt.s32.totalorder %s25, 2
      // Predicated region
      $region17: #{tpu_custom_call.1} parent=5 // pred_check
        %p232 = pneg %p231
      $region18: #{tpu_custom_call.1} parent=5 // pred_check_branch
        %234 = sbr.rel (%p232) target = $region20
      $region19: #{tpu_custom_call.1} parent=5 // pred_region
        // Predicated region
        $region21: #{tpu_custom_call.1} parent=19 // pred_check
          %p235 = pneg %p45
        $region22: #{tpu_custom_call.1} parent=19 // pred_check_branch
          %237 = sbr.rel (%p235) target = $region24
        $region23: #{tpu_custom_call.1} parent=19 // pred_region
          %s238 = sand.u32 %s35, 1
          %s239 = scalar_lea.sflag [#allocation3], %s238
          %s240 = sand.u32 %s35, 1
          %s241 = smul.addr %s240, 64
          %s242 = scalar_lea.vmem [#allocation2], %s241
          %244 = vsyncadd %s239, 0
          %s245 = smul.addr %s25, 8
          %s246 = smul.addr %s245, 8
          %s247 = scalar_lea.hbm %s0, %s246
          %s248 = sshll.u32 %s247, 4
          %s249 = int_to_ptr.hbm [resolvable:$true] %s248
          %s250 = sshll.u32 %s242, 4
          %s251 = int_to_ptr.vmem [resolvable:$true] %s250
          %256 = dma.hbm_to_vmem [thread:$0]  %s249, 1024, %s251, %s239, 512, 512, 32
        $region24: #{tpu_custom_call.1} parent=19 // pred_fallthru
          _
        // Predicated region
        $region25: #{tpu_custom_call.1} parent=19 // pred_check
          %p257 = pneg %p71
        $region26: #{tpu_custom_call.1} parent=19 // pred_check_branch
          %259 = sbr.rel (%p257) target = $region28
        $region27: #{tpu_custom_call.1} parent=19 // pred_region
          %s260 = sand.u32 %s25, 1
          %s261 = scalar_lea.sflag [#allocation6], %s260
          %s262 = sand.u32 %s61, 1
          %s263 = smul.addr %s262, 32
          %s264 = scalar_lea.vmem [#allocation5], %s263
          %266 = vsyncadd %s261, 0
          %s267 = smul.addr %s25, 4
          %s268 = smul.addr %s267, 8
          %s269 = scalar_lea.hbm %s1, %s268
          %s271 = sshll.u32 %s269, 4
          %s272 = int_to_ptr.hbm [resolvable:$true] %s271
          %s273 = sshll.u32 %s264, 4
          %s274 = int_to_ptr.vmem [resolvable:$true] %s273
          %276 = dma.hbm_to_vmem [thread:$0]  %s272, 512, %s274, %s261
        $region28: #{tpu_custom_call.1} parent=19 // pred_fallthru
          _
      $region20: #{tpu_custom_call.1} parent=5 // pred_fallthru
        _
      %p277 = scmp.le.s32.totalorder 1, %s25
      %p278 = scmp.lt.s32.totalorder %s25, 3
      %p279 = pnand %p277, %p278
      %p280 = pneg %p279
      // Predicated region
      $region29: #{tpu_custom_call.1} parent=5 // pred_check
        _
      $region30: #{tpu_custom_call.1} parent=5 // pred_check_branch
        %282 = sbr.rel (%p279) target = $region32
      $region31: #{tpu_custom_call.1} parent=5 // pred_region
        %s283 = ssub.s32 %s25, 1
        %s284 = sand.u32 %s38, 1
        %s285 = scalar_lea.sflag [#allocation3], %s284
        %s286 = sand.u32 %s38, 1
        %s287 = smul.addr %s286, 64
        %s288 = scalar_lea.vmem [#allocation2], %s287
        // Predicated region
        $region33: #{tpu_custom_call.1} parent=31 // pred_check
          %p289 = pneg %p51
        $region34: #{tpu_custom_call.1} parent=31 // pred_check_branch
          %291 = sbr.rel (%p289) target = $region36
        $region35: #{tpu_custom_call.1} parent=31 // pred_region
          %293 = dma.done %s285, 1024
        $region36: #{tpu_custom_call.1} parent=31 // pred_fallthru
          _
        %s294 = sand.u32 %s30, 1
        %s295 = scalar_lea.sflag [#allocation6], %s294
        %s296 = sand.u32 %s64, 1
        %s297 = smul.addr %s296, 32
        %s298 = scalar_lea.vmem [#allocation5], %s297
        // Predicated region
        $region37: #{tpu_custom_call.1} parent=31 // pred_check
          %p299 = pneg %p77
        $region38: #{tpu_custom_call.1} parent=31 // pred_check_branch
          %301 = sbr.rel (%p299) target = $region40
        $region39: #{tpu_custom_call.1} parent=31 // pred_region
          %303 = dma.done %s295, 512
        $region40: #{tpu_custom_call.1} parent=31 // pred_fallthru
          _
        // Predicated region
        $region41: #{tpu_custom_call.1} parent=31 // pred_check
          %p304 = pneg %p98
        $region42: #{tpu_custom_call.1} parent=31 // pred_check_branch
          %306 = sbr.rel (%p304) target = $region44
        $region43: #{tpu_custom_call.1} parent=31 // pred_region
          %308 = dma.done [#allocation6], 32768
        $region44: #{tpu_custom_call.1} parent=31 // pred_fallthru
          _
        %s309 = sand.u32 %s38, 1
        %s310 = scalar_lea.sflag [#allocation3], %s309
        %s311 = sand.u32 %s38, 1
        %s312 = smul.addr %s311, 64
        %s313 = scalar_lea.vmem [#allocation2], %s312
        %p314 = pneg %p51
        %p315 = pneg %p48
        %s316 = sand.u32 %s30, 1
        %s317 = scalar_lea.sflag [#allocation6], %s316
        %s318 = sand.u32 %s64, 1
        %s319 = smul.addr %s318, 32
        %s320 = scalar_lea.vmem [#allocation5], %s319
        %p321 = pneg %p77
        %p322 = pneg %p74
        %p323 = pneg %p98
        %p324 = pneg %p95
        %p325 = pneg %p124
        %p326 = pneg %p121
        %s327 = sand.u32 %s111, 1
        %s328 = scalar_lea.sflag [#allocation4], %s327
        %s329 = sand.u32 %s111, 1
        %s330 = smul.addr %s329, 64
        %s331 = scalar_lea.vmem [#allocation8], %s330
        %p332 = pneg %p150
        %p333 = pneg %p147
        %s334 = sand.u32 %s30, 1
        %s335 = scalar_lea.sflag [#allocation10], %s334
        %s336 = sand.u32 %s137, 1
        %s337 = smul.addr %s336, 32
        %s338 = scalar_lea.vmem [#allocation9], %s337
        %p339 = pneg %p176
        %p340 = pneg %p173
        %p341 = scmp.lt.s32.totalorder %s30, 1
        %s342 = scalar_select %p341, %s30, 1
        %s343 = smul.addr %s342, 2
        %s344 = smul.addr %s343, 8
        %s345 = scalar_lea.vmem %s5, %s344
        %p346 = pneg %p202
        %p347 = pneg %p199
        %s348 = sand.u32 %s30, 1
        %s349 = scalar_lea.sflag [#allocation10], %s348
        %s350 = sand.u32 %s189, 1
        %s351 = smul.addr %s350, 8
        %s352 = scalar_lea.vmem [#allocation11], %s351
        %p353 = scmp.lt.s32.totalorder %s30, 1
        %s354 = scalar_select %p353, %s30, 1
        %s355 = smul.addr %s354, 2
        %s356 = smul.addr %s355, 8
        %s357 = scalar_lea.vmem %s5, %s356
        %v358 = vld [vmem:[%s288] sm:$0xff]
        %v359 = vld [vmem:[%s288 + $0x8] sm:$0xff]
        %v360 = vld [vmem:[%s288 + $0x10] sm:$0xff]
        %v361 = vld [vmem:[%s288 + $0x18] sm:$0xff]
        %v362 = vld [vmem:[%s288 + $0x20] sm:$0xff]
        %v363 = vld [vmem:[%s288 + $0x28] sm:$0xff]
        %v364 = vld [vmem:[%s288 + $0x30] sm:$0xff]
        %v365 = vld [vmem:[%s288 + $0x38] sm:$0xff]
        %v366 = vld [vmem:[%s298] sm:$0xff]
        %v367 = vld [vmem:[%s298 + $0x8] sm:$0xff]
        %v368 = vld [vmem:[%s298 + $0x10] sm:$0xff]
        %v369 = vld [vmem:[%s298 + $0x18] sm:$0xff]
        %v370 = vld [vmem:[#allocation7] sm:$0xff]
        %v371 = vld [vmem:[#allocation7 + $0x8] sm:$0xff]
        %v372 = vld [vmem:[#allocation7 + $0x10] sm:$0xff]
        %v373 = vld [vmem:[#allocation7 + $0x18] sm:$0xff]
        %v374 = vld [vmem:[#allocation7 + $0x20] sm:$0xff]
        %v375 = vld [vmem:[#allocation7 + $0x28] sm:$0xff]
        %v376 = vld [vmem:[#allocation7 + $0x30] sm:$0xff]
        %v377 = vld [vmem:[#allocation7 + $0x38] sm:$0xff]
        %v378 = vld [vmem:[#allocation7 + $0x40] sm:$0xff]
        %v379 = vld [vmem:[#allocation7 + $0x48] sm:$0xff]
        %v380 = vld [vmem:[#allocation7 + $0x50] sm:$0xff]
        %v381 = vld [vmem:[#allocation7 + $0x58] sm:$0xff]
        %v382 = vld [vmem:[#allocation7 + $0x60] sm:$0xff]
        %v383 = vld [vmem:[#allocation7 + $0x68] sm:$0xff]
        %v384 = vld [vmem:[#allocation7 + $0x70] sm:$0xff]
        %v385 = vld [vmem:[#allocation7 + $0x78] sm:$0xff]
        %v386 = vld [vmem:[#allocation7 + $0x80] sm:$0xff]
        %v387 = vld [vmem:[#allocation7 + $0x88] sm:$0xff]
        %v388 = vld [vmem:[#allocation7 + $0x90] sm:$0xff]
        %v389 = vld [vmem:[#allocation7 + $0x98] sm:$0xff]
        %v390 = vld [vmem:[#allocation7 + $0xa0] sm:$0xff]
        %v391 = vld [vmem:[#allocation7 + $0xa8] sm:$0xff]
        %v392 = vld [vmem:[#allocation7 + $0xb0] sm:$0xff]
        %v393 = vld [vmem:[#allocation7 + $0xb8] sm:$0xff]
        %v394 = vld [vmem:[#allocation7 + $0xc0] sm:$0xff]
        %v395 = vld [vmem:[#allocation7 + $0xc8] sm:$0xff]
        %v396 = vld [vmem:[#allocation7 + $0xd0] sm:$0xff]
        %v397 = vld [vmem:[#allocation7 + $0xd8] sm:$0xff]
        %v398 = vld [vmem:[#allocation7 + $0xe0] sm:$0xff]
        %v399 = vld [vmem:[#allocation7 + $0xe8] sm:$0xff]
        %v400 = vld [vmem:[#allocation7 + $0xf0] sm:$0xff]
        %v401 = vld [vmem:[#allocation7 + $0xf8] sm:$0xff]
        %v402 = vld [vmem:[#allocation7 + $0x100] sm:$0xff]
        %v403 = vld [vmem:[#allocation7 + $0x108] sm:$0xff]
        %v404 = vld [vmem:[#allocation7 + $0x110] sm:$0xff]
        %v405 = vld [vmem:[#allocation7 + $0x118] sm:$0xff]
        %v406 = vld [vmem:[#allocation7 + $0x120] sm:$0xff]
        %v407 = vld [vmem:[#allocation7 + $0x128] sm:$0xff]
        %v408 = vld [vmem:[#allocation7 + $0x130] sm:$0xff]
        %v409 = vld [vmem:[#allocation7 + $0x138] sm:$0xff]
        %v410 = vld [vmem:[#allocation7 + $0x140] sm:$0xff]
        %v411 = vld [vmem:[#allocation7 + $0x148] sm:$0xff]
        %v412 = vld [vmem:[#allocation7 + $0x150] sm:$0xff]
        %v413 = vld [vmem:[#allocation7 + $0x158] sm:$0xff]
        %v414 = vld [vmem:[#allocation7 + $0x160] sm:$0xff]
        %v415 = vld [vmem:[#allocation7 + $0x168] sm:$0xff]
        %v416 = vld [vmem:[#allocation7 + $0x170] sm:$0xff]
        %v417 = vld [vmem:[#allocation7 + $0x178] sm:$0xff]
        %v418 = vld [vmem:[#allocation7 + $0x180] sm:$0xff]
        %v419 = vld [vmem:[#allocation7 + $0x188] sm:$0xff]
        %v420 = vld [vmem:[#allocation7 + $0x190] sm:$0xff]
        %v421 = vld [vmem:[#allocation7 + $0x198] sm:$0xff]
        %v422 = vld [vmem:[#allocation7 + $0x1a0] sm:$0xff]
        %v423 = vld [vmem:[#allocation7 + $0x1a8] sm:$0xff]
        %v424 = vld [vmem:[#allocation7 + $0x1b0] sm:$0xff]
        %v425 = vld [vmem:[#allocation7 + $0x1b8] sm:$0xff]
        %v426 = vld [vmem:[#allocation7 + $0x1c0] sm:$0xff]
        %v427 = vld [vmem:[#allocation7 + $0x1c8] sm:$0xff]
        %v428 = vld [vmem:[#allocation7 + $0x1d0] sm:$0xff]
        %v429 = vld [vmem:[#allocation7 + $0x1d8] sm:$0xff]
        %v430 = vld [vmem:[#allocation7 + $0x1e0] sm:$0xff]
        %v431 = vld [vmem:[#allocation7 + $0x1e8] sm:$0xff]
        %v432 = vld [vmem:[#allocation7 + $0x1f0] sm:$0xff]
        %v433 = vld [vmem:[#allocation7 + $0x1f8] sm:$0xff]
        %v434 = vld [vmem:[#allocation7 + $0x200] sm:$0xff]
        %v435 = vld [vmem:[#allocation7 + $0x208] sm:$0xff]
        %v436 = vld [vmem:[#allocation7 + $0x210] sm:$0xff]
        %v437 = vld [vmem:[#allocation7 + $0x218] sm:$0xff]
        %v438 = vld [vmem:[#allocation7 + $0x220] sm:$0xff]
        %v439 = vld [vmem:[#allocation7 + $0x228] sm:$0xff]
        %v440 = vld [vmem:[#allocation7 + $0x230] sm:$0xff]
        %v441 = vld [vmem:[#allocation7 + $0x238] sm:$0xff]
        %v442 = vld [vmem:[#allocation7 + $0x240] sm:$0xff]
        %v443 = vld [vmem:[#allocation7 + $0x248] sm:$0xff]
        %v444 = vld [vmem:[#allocation7 + $0x250] sm:$0xff]
        %v445 = vld [vmem:[#allocation7 + $0x258] sm:$0xff]
        %v446 = vld [vmem:[#allocation7 + $0x260] sm:$0xff]
        %v447 = vld [vmem:[#allocation7 + $0x268] sm:$0xff]
        %v448 = vld [vmem:[#allocation7 + $0x270] sm:$0xff]
        %v449 = vld [vmem:[#allocation7 + $0x278] sm:$0xff]
        %v450 = vld [vmem:[#allocation7 + $0x280] sm:$0xff]
        %v451 = vld [vmem:[#allocation7 + $0x288] sm:$0xff]
        %v452 = vld [vmem:[#allocation7 + $0x290] sm:$0xff]
        %v453 = vld [vmem:[#allocation7 + $0x298] sm:$0xff]
        %v454 = vld [vmem:[#allocation7 + $0x2a0] sm:$0xff]
        %v455 = vld [vmem:[#allocation7 + $0x2a8] sm:$0xff]
        %v456 = vld [vmem:[#allocation7 + $0x2b0] sm:$0xff]
        %v457 = vld [vmem:[#allocation7 + $0x2b8] sm:$0xff]
        %v458 = vld [vmem:[#allocation7 + $0x2c0] sm:$0xff]
        %v459 = vld [vmem:[#allocation7 + $0x2c8] sm:$0xff]
        %v460 = vld [vmem:[#allocation7 + $0x2d0] sm:$0xff]
        %v461 = vld [vmem:[#allocation7 + $0x2d8] sm:$0xff]
        %v462 = vld [vmem:[#allocation7 + $0x2e0] sm:$0xff]
        %v463 = vld [vmem:[#allocation7 + $0x2e8] sm:$0xff]
        %v464 = vld [vmem:[#allocation7 + $0x2f0] sm:$0xff]
        %v465 = vld [vmem:[#allocation7 + $0x2f8] sm:$0xff]
        %v466 = vld [vmem:[#allocation7 + $0x300] sm:$0xff]
        %v467 = vld [vmem:[#allocation7 + $0x308] sm:$0xff]
        %v468 = vld [vmem:[#allocation7 + $0x310] sm:$0xff]
        %v469 = vld [vmem:[#allocation7 + $0x318] sm:$0xff]
        %v470 = vld [vmem:[#allocation7 + $0x320] sm:$0xff]
        %v471 = vld [vmem:[#allocation7 + $0x328] sm:$0xff]
        %v472 = vld [vmem:[#allocation7 + $0x330] sm:$0xff]
        %v473 = vld [vmem:[#allocation7 + $0x338] sm:$0xff]
        %v474 = vld [vmem:[#allocation7 + $0x340] sm:$0xff]
        %v475 = vld [vmem:[#allocation7 + $0x348] sm:$0xff]
        %v476 = vld [vmem:[#allocation7 + $0x350] sm:$0xff]
        %v477 = vld [vmem:[#allocation7 + $0x358] sm:$0xff]
        %v478 = vld [vmem:[#allocation7 + $0x360] sm:$0xff]
        %v479 = vld [vmem:[#allocation7 + $0x368] sm:$0xff]
        %v480 = vld [vmem:[#allocation7 + $0x370] sm:$0xff]
        %v481 = vld [vmem:[#allocation7 + $0x378] sm:$0xff]
        %v482 = vld [vmem:[#allocation7 + $0x380] sm:$0xff]
        %v483 = vld [vmem:[#allocation7 + $0x388] sm:$0xff]
        %v484 = vld [vmem:[#allocation7 + $0x390] sm:$0xff]
        %v485 = vld [vmem:[#allocation7 + $0x398] sm:$0xff]
        %v486 = vld [vmem:[#allocation7 + $0x3a0] sm:$0xff]
        %v487 = vld [vmem:[#allocation7 + $0x3a8] sm:$0xff]
        %v488 = vld [vmem:[#allocation7 + $0x3b0] sm:$0xff]
        %v489 = vld [vmem:[#allocation7 + $0x3b8] sm:$0xff]
        %v490 = vld [vmem:[#allocation7 + $0x3c0] sm:$0xff]
        %v491 = vld [vmem:[#allocation7 + $0x3c8] sm:$0xff]
        %v492 = vld [vmem:[#allocation7 + $0x3d0] sm:$0xff]
        %v493 = vld [vmem:[#allocation7 + $0x3d8] sm:$0xff]
        %v494 = vld [vmem:[#allocation7 + $0x3e0] sm:$0xff]
        %v495 = vld [vmem:[#allocation7 + $0x3e8] sm:$0xff]
        %v496 = vld [vmem:[#allocation7 + $0x3f0] sm:$0xff]
        %v497 = vld [vmem:[#allocation7 + $0x3f8] sm:$0xff]
        %v498 = vld [vmem:[#allocation7 + $0x400] sm:$0xff]
        %v499 = vld [vmem:[#allocation7 + $0x408] sm:$0xff]
        %v500 = vld [vmem:[#allocation7 + $0x410] sm:$0xff]
        %v501 = vld [vmem:[#allocation7 + $0x418] sm:$0xff]
        %v502 = vld [vmem:[#allocation7 + $0x420] sm:$0xff]
        %v503 = vld [vmem:[#allocation7 + $0x428] sm:$0xff]
        %v504 = vld [vmem:[#allocation7 + $0x430] sm:$0xff]
        %v505 = vld [vmem:[#allocation7 + $0x438] sm:$0xff]
        %v506 = vld [vmem:[#allocation7 + $0x440] sm:$0xff]
        %v507 = vld [vmem:[#allocation7 + $0x448] sm:$0xff]
        %v508 = vld [vmem:[#allocation7 + $0x450] sm:$0xff]
        %v509 = vld [vmem:[#allocation7 + $0x458] sm:$0xff]
        %v510 = vld [vmem:[#allocation7 + $0x460] sm:$0xff]
        %v511 = vld [vmem:[#allocation7 + $0x468] sm:$0xff]
        %v512 = vld [vmem:[#allocation7 + $0x470] sm:$0xff]
        %v513 = vld [vmem:[#allocation7 + $0x478] sm:$0xff]
        %v514 = vld [vmem:[#allocation7 + $0x480] sm:$0xff]
        %v515 = vld [vmem:[#allocation7 + $0x488] sm:$0xff]
        %v516 = vld [vmem:[#allocation7 + $0x490] sm:$0xff]
        %v517 = vld [vmem:[#allocation7 + $0x498] sm:$0xff]
        %v518 = vld [vmem:[#allocation7 + $0x4a0] sm:$0xff]
        %v519 = vld [vmem:[#allocation7 + $0x4a8] sm:$0xff]
        %v520 = vld [vmem:[#allocation7 + $0x4b0] sm:$0xff]
        %v521 = vld [vmem:[#allocation7 + $0x4b8] sm:$0xff]
        %v522 = vld [vmem:[#allocation7 + $0x4c0] sm:$0xff]
        %v523 = vld [vmem:[#allocation7 + $0x4c8] sm:$0xff]
        %v524 = vld [vmem:[#allocation7 + $0x4d0] sm:$0xff]
        %v525 = vld [vmem:[#allocation7 + $0x4d8] sm:$0xff]
        %v526 = vld [vmem:[#allocation7 + $0x4e0] sm:$0xff]
        %v527 = vld [vmem:[#allocation7 + $0x4e8] sm:$0xff]
        %v528 = vld [vmem:[#allocation7 + $0x4f0] sm:$0xff]
        %v529 = vld [vmem:[#allocation7 + $0x4f8] sm:$0xff]
        %v530 = vld [vmem:[#allocation7 + $0x500] sm:$0xff]
        %v531 = vld [vmem:[#allocation7 + $0x508] sm:$0xff]
        %v532 = vld [vmem:[#allocation7 + $0x510] sm:$0xff]
        %v533 = vld [vmem:[#allocation7 + $0x518] sm:$0xff]
        %v534 = vld [vmem:[#allocation7 + $0x520] sm:$0xff]
        %v535 = vld [vmem:[#allocation7 + $0x528] sm:$0xff]
        %v536 = vld [vmem:[#allocation7 + $0x530] sm:$0xff]
        %v537 = vld [vmem:[#allocation7 + $0x538] sm:$0xff]
        %v538 = vld [vmem:[#allocation7 + $0x540] sm:$0xff]
        %v539 = vld [vmem:[#allocation7 + $0x548] sm:$0xff]
        %v540 = vld [vmem:[#allocation7 + $0x550] sm:$0xff]
        %v541 = vld [vmem:[#allocation7 + $0x558] sm:$0xff]
        %v542 = vld [vmem:[#allocation7 + $0x560] sm:$0xff]
        %v543 = vld [vmem:[#allocation7 + $0x568] sm:$0xff]
        %v544 = vld [vmem:[#allocation7 + $0x570] sm:$0xff]
        %v545 = vld [vmem:[#allocation7 + $0x578] sm:$0xff]
        %v546 = vld [vmem:[#allocation7 + $0x580] sm:$0xff]
        %v547 = vld [vmem:[#allocation7 + $0x588] sm:$0xff]
        %v548 = vld [vmem:[#allocation7 + $0x590] sm:$0xff]
        %v549 = vld [vmem:[#allocation7 + $0x598] sm:$0xff]
        %v550 = vld [vmem:[#allocation7 + $0x5a0] sm:$0xff]
        %v551 = vld [vmem:[#allocation7 + $0x5a8] sm:$0xff]
        %v552 = vld [vmem:[#allocation7 + $0x5b0] sm:$0xff]
        %v553 = vld [vmem:[#allocation7 + $0x5b8] sm:$0xff]
        %v554 = vld [vmem:[#allocation7 + $0x5c0] sm:$0xff]
        %v555 = vld [vmem:[#allocation7 + $0x5c8] sm:$0xff]
        %v556 = vld [vmem:[#allocation7 + $0x5d0] sm:$0xff]
        %v557 = vld [vmem:[#allocation7 + $0x5d8] sm:$0xff]
        %v558 = vld [vmem:[#allocation7 + $0x5e0] sm:$0xff]
        %v559 = vld [vmem:[#allocation7 + $0x5e8] sm:$0xff]
        %v560 = vld [vmem:[#allocation7 + $0x5f0] sm:$0xff]
        %v561 = vld [vmem:[#allocation7 + $0x5f8] sm:$0xff]
        %v562 = vld [vmem:[#allocation7 + $0x600] sm:$0xff]
        %v563 = vld [vmem:[#allocation7 + $0x608] sm:$0xff]
        %v564 = vld [vmem:[#allocation7 + $0x610] sm:$0xff]
        %v565 = vld [vmem:[#allocation7 + $0x618] sm:$0xff]
        %v566 = vld [vmem:[#allocation7 + $0x620] sm:$0xff]
        %v567 = vld [vmem:[#allocation7 + $0x628] sm:$0xff]
        %v568 = vld [vmem:[#allocation7 + $0x630] sm:$0xff]
        %v569 = vld [vmem:[#allocation7 + $0x638] sm:$0xff]
        %v570 = vld [vmem:[#allocation7 + $0x640] sm:$0xff]
        %v571 = vld [vmem:[#allocation7 + $0x648] sm:$0xff]
        %v572 = vld [vmem:[#allocation7 + $0x650] sm:$0xff]
        %v573 = vld [vmem:[#allocation7 + $0x658] sm:$0xff]
        %v574 = vld [vmem:[#allocation7 + $0x660] sm:$0xff]
        %v575 = vld [vmem:[#allocation7 + $0x668] sm:$0xff]
        %v576 = vld [vmem:[#allocation7 + $0x670] sm:$0xff]
        %v577 = vld [vmem:[#allocation7 + $0x678] sm:$0xff]
        %v578 = vld [vmem:[#allocation7 + $0x680] sm:$0xff]
        %v579 = vld [vmem:[#allocation7 + $0x688] sm:$0xff]
        %v580 = vld [vmem:[#allocation7 + $0x690] sm:$0xff]
        %v581 = vld [vmem:[#allocation7 + $0x698] sm:$0xff]
        %v582 = vld [vmem:[#allocation7 + $0x6a0] sm:$0xff]
        %v583 = vld [vmem:[#allocation7 + $0x6a8] sm:$0xff]
        %v584 = vld [vmem:[#allocation7 + $0x6b0] sm:$0xff]
        %v585 = vld [vmem:[#allocation7 + $0x6b8] sm:$0xff]
        %v586 = vld [vmem:[#allocation7 + $0x6c0] sm:$0xff]
        %v587 = vld [vmem:[#allocation7 + $0x6c8] sm:$0xff]
        %v588 = vld [vmem:[#allocation7 + $0x6d0] sm:$0xff]
        %v589 = vld [vmem:[#allocation7 + $0x6d8] sm:$0xff]
        %v590 = vld [vmem:[#allocation7 + $0x6e0] sm:$0xff]
        %v591 = vld [vmem:[#allocation7 + $0x6e8] sm:$0xff]
        %v592 = vld [vmem:[#allocation7 + $0x6f0] sm:$0xff]
        %v593 = vld [vmem:[#allocation7 + $0x6f8] sm:$0xff]
        %v594 = vld [vmem:[#allocation7 + $0x700] sm:$0xff]
        %v595 = vld [vmem:[#allocation7 + $0x708] sm:$0xff]
        %v596 = vld [vmem:[#allocation7 + $0x710] sm:$0xff]
        %v597 = vld [vmem:[#allocation7 + $0x718] sm:$0xff]
        %v598 = vld [vmem:[#allocation7 + $0x720] sm:$0xff]
        %v599 = vld [vmem:[#allocation7 + $0x728] sm:$0xff]
        %v600 = vld [vmem:[#allocation7 + $0x730] sm:$0xff]
        %v601 = vld [vmem:[#allocation7 + $0x738] sm:$0xff]
        %v602 = vld [vmem:[#allocation7 + $0x740] sm:$0xff]
        %v603 = vld [vmem:[#allocation7 + $0x748] sm:$0xff]
        %v604 = vld [vmem:[#allocation7 + $0x750] sm:$0xff]
        %v605 = vld [vmem:[#allocation7 + $0x758] sm:$0xff]
        %v606 = vld [vmem:[#allocation7 + $0x760] sm:$0xff]
        %v607 = vld [vmem:[#allocation7 + $0x768] sm:$0xff]
        %v608 = vld [vmem:[#allocation7 + $0x770] sm:$0xff]
        %v609 = vld [vmem:[#allocation7 + $0x778] sm:$0xff]
        %v610 = vld [vmem:[#allocation7 + $0x780] sm:$0xff]
        %v611 = vld [vmem:[#allocation7 + $0x788] sm:$0xff]
        %v612 = vld [vmem:[#allocation7 + $0x790] sm:$0xff]
        %v613 = vld [vmem:[#allocation7 + $0x798] sm:$0xff]
        %v614 = vld [vmem:[#allocation7 + $0x7a0] sm:$0xff]
        %v615 = vld [vmem:[#allocation7 + $0x7a8] sm:$0xff]
        %v616 = vld [vmem:[#allocation7 + $0x7b0] sm:$0xff]
        %v617 = vld [vmem:[#allocation7 + $0x7b8] sm:$0xff]
        %v618 = vld [vmem:[#allocation7 + $0x7c0] sm:$0xff]
        %v619 = vld [vmem:[#allocation7 + $0x7c8] sm:$0xff]
        %v620 = vld [vmem:[#allocation7 + $0x7d0] sm:$0xff]
        %v621 = vld [vmem:[#allocation7 + $0x7d8] sm:$0xff]
        %v622 = vld [vmem:[#allocation7 + $0x7e0] sm:$0xff]
        %v623 = vld [vmem:[#allocation7 + $0x7e8] sm:$0xff]
        %v624 = vld [vmem:[#allocation7 + $0x7f0] sm:$0xff]
        %v625 = vld [vmem:[#allocation7 + $0x7f8] sm:$0xff]
        %626 = vmatpush.msra.mxu0 %v430
        %627 = vmatpush.msra.mxu0 %v426
        %628 = vmatpush.msra.mxu0 %v422
        %629 = vmatpush.msra.mxu0 %v418
        %630 = vmatpush.msra.mxu0 %v414
        %631 = vmatpush.msra.mxu0 %v410
        %632 = vmatpush.msra.mxu0 %v406
        %633 = vmatpush.msra.mxu0 %v402
        %634 = vmatpush.msra.mxu0 %v398
        %635 = vmatpush.msra.mxu0 %v394
        %636 = vmatpush.msra.mxu0 %v390
        %637 = vmatpush.msra.mxu0 %v386
        %638 = vmatpush.msra.mxu0 %v382
        %639 = vmatpush.msra.mxu0 %v378
        %640 = vmatpush.msra.mxu0 %v374
        %641 = vmatpush.msra.mxu0 %v370
        %642 = vmatmul.f32.gmra.mxu0 %v358
        %v643 = vpop.f32.mrf.mxu0
        %v644 = vadd.f32 0.0, %v643
        %645 = vmatmul.f32.gmra.mxu0 %v362
        %v646 = vpop.f32.mrf.mxu0
        %v647 = vadd.f32 0.0, %v646
        %648 = vdwg.mxu0
        %649 = vmatpush.msra.mxu0 %v494
        %650 = vmatpush.msra.mxu0 %v490
        %651 = vmatpush.msra.mxu0 %v486
        %652 = vmatpush.msra.mxu0 %v482
        %653 = vmatpush.msra.mxu0 %v478
        %654 = vmatpush.msra.mxu0 %v474
        %655 = vmatpush.msra.mxu0 %v470
        %656 = vmatpush.msra.mxu0 %v466
        %657 = vmatpush.msra.mxu0 %v462
        %658 = vmatpush.msra.mxu0 %v458
        %659 = vmatpush.msra.mxu0 %v454
        %660 = vmatpush.msra.mxu0 %v450
        %661 = vmatpush.msra.mxu0 %v446
        %662 = vmatpush.msra.mxu0 %v442
        %663 = vmatpush.msra.mxu0 %v438
        %664 = vmatpush.msra.mxu0 %v434
        %665 = vmatmul.f32.gmra.mxu0 %v359
        %v666 = vpop.f32.mrf.mxu0
        %v667 = vadd.f32 %v644, %v666
        %668 = vmatmul.f32.gmra.mxu0 %v363
        %v669 = vpop.f32.mrf.mxu0
        %v670 = vadd.f32 %v647, %v669
        %671 = vdwg.mxu0
        %672 = vmatpush.msra.mxu0 %v558
        %673 = vmatpush.msra.mxu0 %v554
        %674 = vmatpush.msra.mxu0 %v550
        %675 = vmatpush.msra.mxu0 %v546
        %676 = vmatpush.msra.mxu0 %v542
        %677 = vmatpush.msra.mxu0 %v538
        %678 = vmatpush.msra.mxu0 %v534
        %679 = vmatpush.msra.mxu0 %v530
        %680 = vmatpush.msra.mxu0 %v526
        %681 = vmatpush.msra.mxu0 %v522
        %682 = vmatpush.msra.mxu0 %v518
        %683 = vmatpush.msra.mxu0 %v514
        %684 = vmatpush.msra.mxu0 %v510
        %685 = vmatpush.msra.mxu0 %v506
        %686 = vmatpush.msra.mxu0 %v502
        %687 = vmatpush.msra.mxu0 %v498
        %688 = vmatmul.f32.gmra.mxu0 %v360
        %v689 = vpop.f32.mrf.mxu0
        %v690 = vadd.f32 %v667, %v689
        %691 = vmatmul.f32.gmra.mxu0 %v364
        %v692 = vpop.f32.mrf.mxu0
        %v693 = vadd.f32 %v670, %v692
        %694 = vdwg.mxu0
        %695 = vmatpush.msra.mxu0 %v622
        %696 = vmatpush.msra.mxu0 %v618
        %697 = vmatpush.msra.mxu0 %v614
        %698 = vmatpush.msra.mxu0 %v610
        %699 = vmatpush.msra.mxu0 %v606
        %700 = vmatpush.msra.mxu0 %v602
        %701 = vmatpush.msra.mxu0 %v598
        %702 = vmatpush.msra.mxu0 %v594
        %703 = vmatpush.msra.mxu0 %v590
        %704 = vmatpush.msra.mxu0 %v586
        %705 = vmatpush.msra.mxu0 %v582
        %706 = vmatpush.msra.mxu0 %v578
        %707 = vmatpush.msra.mxu0 %v574
        %708 = vmatpush.msra.mxu0 %v570
        %709 = vmatpush.msra.mxu0 %v566
        %710 = vmatpush.msra.mxu0 %v562
        %711 = vmatmul.f32.gmra.mxu0 %v361
        %v712 = vpop.f32.mrf.mxu0
        %v713 = vadd.f32 %v690, %v712
        %714 = vmatmul.f32.gmra.mxu0 %v365
        %v715 = vpop.f32.mrf.mxu0
        %v716 = vadd.f32 %v693, %v715
        %717 = vdwg.mxu0
        %718 = vmatpush.msra.mxu0 %v431
        %719 = vmatpush.msra.mxu0 %v427
        %720 = vmatpush.msra.mxu0 %v423
        %721 = vmatpush.msra.mxu0 %v419
        %722 = vmatpush.msra.mxu0 %v415
        %723 = vmatpush.msra.mxu0 %v411
        %724 = vmatpush.msra.mxu0 %v407
        %725 = vmatpush.msra.mxu0 %v403
        %726 = vmatpush.msra.mxu0 %v399
        %727 = vmatpush.msra.mxu0 %v395
        %728 = vmatpush.msra.mxu0 %v391
        %729 = vmatpush.msra.mxu0 %v387
        %730 = vmatpush.msra.mxu0 %v383
        %731 = vmatpush.msra.mxu0 %v379
        %732 = vmatpush.msra.mxu0 %v375
        %733 = vmatpush.msra.mxu0 %v371
        %734 = vmatmul.f32.gmra.mxu0 %v358
        %v735 = vpop.f32.mrf.mxu0
        %v736 = vadd.f32 0.0, %v735
        %737 = vmatmul.f32.gmra.mxu0 %v362
        %v738 = vpop.f32.mrf.mxu0
        %v739 = vadd.f32 0.0, %v738
        %740 = vdwg.mxu0
        %741 = vmatpush.msra.mxu0 %v495
        %742 = vmatpush.msra.mxu0 %v491
        %743 = vmatpush.msra.mxu0 %v487
        %744 = vmatpush.msra.mxu0 %v483
        %745 = vmatpush.msra.mxu0 %v479
        %746 = vmatpush.msra.mxu0 %v475
        %747 = vmatpush.msra.mxu0 %v471
        %748 = vmatpush.msra.mxu0 %v467
        %749 = vmatpush.msra.mxu0 %v463
        %750 = vmatpush.msra.mxu0 %v459
        %751 = vmatpush.msra.mxu0 %v455
        %752 = vmatpush.msra.mxu0 %v451
        %753 = vmatpush.msra.mxu0 %v447
        %754 = vmatpush.msra.mxu0 %v443
        %755 = vmatpush.msra.mxu0 %v439
        %756 = vmatpush.msra.mxu0 %v435
        %757 = vmatmul.f32.gmra.mxu0 %v359
        %v758 = vpop.f32.mrf.mxu0
        %v759 = vadd.f32 %v736, %v758
        %760 = vmatmul.f32.gmra.mxu0 %v363
        %v761 = vpop.f32.mrf.mxu0
        %v762 = vadd.f32 %v739, %v761
        %763 = vdwg.mxu0
        %764 = vmatpush.msra.mxu0 %v559
        %765 = vmatpush.msra.mxu0 %v555
        %766 = vmatpush.msra.mxu0 %v551
        %767 = vmatpush.msra.mxu0 %v547
        %768 = vmatpush.msra.mxu0 %v543
        %769 = vmatpush.msra.mxu0 %v539
        %770 = vmatpush.msra.mxu0 %v535
        %771 = vmatpush.msra.mxu0 %v531
        %772 = vmatpush.msra.mxu0 %v527
        %773 = vmatpush.msra.mxu0 %v523
        %774 = vmatpush.msra.mxu0 %v519
        %775 = vmatpush.msra.mxu0 %v515
        %776 = vmatpush.msra.mxu0 %v511
        %777 = vmatpush.msra.mxu0 %v507
        %778 = vmatpush.msra.mxu0 %v503
        %779 = vmatpush.msra.mxu0 %v499
        %780 = vmatmul.f32.gmra.mxu0 %v360
        %v781 = vpop.f32.mrf.mxu0
        %v782 = vadd.f32 %v759, %v781
        %783 = vmatmul.f32.gmra.mxu0 %v364
        %v784 = vpop.f32.mrf.mxu0
        %v785 = vadd.f32 %v762, %v784
        %786 = vdwg.mxu0
        %787 = vmatpush.msra.mxu0 %v623
        %788 = vmatpush.msra.mxu0 %v619
        %789 = vmatpush.msra.mxu0 %v615
        %790 = vmatpush.msra.mxu0 %v611
        %791 = vmatpush.msra.mxu0 %v607
        %792 = vmatpush.msra.mxu0 %v603
        %793 = vmatpush.msra.mxu0 %v599
        %794 = vmatpush.msra.mxu0 %v595
        %795 = vmatpush.msra.mxu0 %v591
        %796 = vmatpush.msra.mxu0 %v587
        %797 = vmatpush.msra.mxu0 %v583
        %798 = vmatpush.msra.mxu0 %v579
        %799 = vmatpush.msra.mxu0 %v575
        %800 = vmatpush.msra.mxu0 %v571
        %801 = vmatpush.msra.mxu0 %v567
        %802 = vmatpush.msra.mxu0 %v563
        %803 = vmatmul.f32.gmra.mxu0 %v361
        %v804 = vpop.f32.mrf.mxu0
        %v805 = vadd.f32 %v782, %v804
        %806 = vmatmul.f32.gmra.mxu0 %v365
        %v807 = vpop.f32.mrf.mxu0
        %v808 = vadd.f32 %v785, %v807
        %809 = vdwg.mxu0
        %810 = vmatpush.msra.mxu0 %v432
        %811 = vmatpush.msra.mxu0 %v428
        %812 = vmatpush.msra.mxu0 %v424
        %813 = vmatpush.msra.mxu0 %v420
        %814 = vmatpush.msra.mxu0 %v416
        %815 = vmatpush.msra.mxu0 %v412
        %816 = vmatpush.msra.mxu0 %v408
        %817 = vmatpush.msra.mxu0 %v404
        %818 = vmatpush.msra.mxu0 %v400
        %819 = vmatpush.msra.mxu0 %v396
        %820 = vmatpush.msra.mxu0 %v392
        %821 = vmatpush.msra.mxu0 %v388
        %822 = vmatpush.msra.mxu0 %v384
        %823 = vmatpush.msra.mxu0 %v380
        %824 = vmatpush.msra.mxu0 %v376
        %825 = vmatpush.msra.mxu0 %v372
        %826 = vmatmul.f32.gmra.mxu0 %v358
        %v827 = vpop.f32.mrf.mxu0
        %v828 = vadd.f32 0.0, %v827
        %829 = vmatmul.f32.gmra.mxu0 %v362
        %v830 = vpop.f32.mrf.mxu0
        %v831 = vadd.f32 0.0, %v830
        %832 = vdwg.mxu0
        %833 = vmatpush.msra.mxu0 %v496
        %834 = vmatpush.msra.mxu0 %v492
        %835 = vmatpush.msra.mxu0 %v488
        %836 = vmatpush.msra.mxu0 %v484
        %837 = vmatpush.msra.mxu0 %v480
        %838 = vmatpush.msra.mxu0 %v476
        %839 = vmatpush.msra.mxu0 %v472
        %840 = vmatpush.msra.mxu0 %v468
        %841 = vmatpush.msra.mxu0 %v464
        %842 = vmatpush.msra.mxu0 %v460
        %843 = vmatpush.msra.mxu0 %v456
        %844 = vmatpush.msra.mxu0 %v452
        %845 = vmatpush.msra.mxu0 %v448
        %846 = vmatpush.msra.mxu0 %v444
        %847 = vmatpush.msra.mxu0 %v440
        %848 = vmatpush.msra.mxu0 %v436
        %849 = vmatmul.f32.gmra.mxu0 %v359
        %v850 = vpop.f32.mrf.mxu0
        %v851 = vadd.f32 %v828, %v850
        %852 = vmatmul.f32.gmra.mxu0 %v363
        %v853 = vpop.f32.mrf.mxu0
        %v854 = vadd.f32 %v831, %v853
        %855 = vdwg.mxu0
        %856 = vmatpush.msra.mxu0 %v560
        %857 = vmatpush.msra.mxu0 %v556
        %858 = vmatpush.msra.mxu0 %v552
        %859 = vmatpush.msra.mxu0 %v548
        %860 = vmatpush.msra.mxu0 %v544
        %861 = vmatpush.msra.mxu0 %v540
        %862 = vmatpush.msra.mxu0 %v536
        %863 = vmatpush.msra.mxu0 %v532
        %864 = vmatpush.msra.mxu0 %v528
        %865 = vmatpush.msra.mxu0 %v524
        %866 = vmatpush.msra.mxu0 %v520
        %867 = vmatpush.msra.mxu0 %v516
        %868 = vmatpush.msra.mxu0 %v512
        %869 = vmatpush.msra.mxu0 %v508
        %870 = vmatpush.msra.mxu0 %v504
        %871 = vmatpush.msra.mxu0 %v500
        %872 = vmatmul.f32.gmra.mxu0 %v360
        %v873 = vpop.f32.mrf.mxu0
        %v874 = vadd.f32 %v851, %v873
        %875 = vmatmul.f32.gmra.mxu0 %v364
        %v876 = vpop.f32.mrf.mxu0
        %v877 = vadd.f32 %v854, %v876
        %878 = vdwg.mxu0
        %879 = vmatpush.msra.mxu0 %v624
        %880 = vmatpush.msra.mxu0 %v620
        %881 = vmatpush.msra.mxu0 %v616
        %882 = vmatpush.msra.mxu0 %v612
        %883 = vmatpush.msra.mxu0 %v608
        %884 = vmatpush.msra.mxu0 %v604
        %885 = vmatpush.msra.mxu0 %v600
        %886 = vmatpush.msra.mxu0 %v596
        %887 = vmatpush.msra.mxu0 %v592
        %888 = vmatpush.msra.mxu0 %v588
        %889 = vmatpush.msra.mxu0 %v584
        %890 = vmatpush.msra.mxu0 %v580
        %891 = vmatpush.msra.mxu0 %v576
        %892 = vmatpush.msra.mxu0 %v572
        %893 = vmatpush.msra.mxu0 %v568
        %894 = vmatpush.msra.mxu0 %v564
        %895 = vmatmul.f32.gmra.mxu0 %v361
        %v896 = vpop.f32.mrf.mxu0
        %v897 = vadd.f32 %v874, %v896
        %898 = vmatmul.f32.gmra.mxu0 %v365
        %v899 = vpop.f32.mrf.mxu0
        %v900 = vadd.f32 %v877, %v899
        %901 = vdwg.mxu0
        %902 = vmatpush.msra.mxu0 %v433
        %903 = vmatpush.msra.mxu0 %v429
        %904 = vmatpush.msra.mxu0 %v425
        %905 = vmatpush.msra.mxu0 %v421
        %906 = vmatpush.msra.mxu0 %v417
        %907 = vmatpush.msra.mxu0 %v413
        %908 = vmatpush.msra.mxu0 %v409
        %909 = vmatpush.msra.mxu0 %v405
        %910 = vmatpush.msra.mxu0 %v401
        %911 = vmatpush.msra.mxu0 %v397
        %912 = vmatpush.msra.mxu0 %v393
        %913 = vmatpush.msra.mxu0 %v389
        %914 = vmatpush.msra.mxu0 %v385
        %915 = vmatpush.msra.mxu0 %v381
        %916 = vmatpush.msra.mxu0 %v377
        %917 = vmatpush.msra.mxu0 %v373
        %918 = vmatmul.f32.gmra.mxu0 %v358
        %v919 = vpop.f32.mrf.mxu0
        %v920 = vadd.f32 0.0, %v919
        %921 = vmatmul.f32.gmra.mxu0 %v362
        %v922 = vpop.f32.mrf.mxu0
        %v923 = vadd.f32 0.0, %v922
        %924 = vdwg.mxu0
        %925 = vmatpush.msra.mxu0 %v497
        %926 = vmatpush.msra.mxu0 %v493
        %927 = vmatpush.msra.mxu0 %v489
        %928 = vmatpush.msra.mxu0 %v485
        %929 = vmatpush.msra.mxu0 %v481
        %930 = vmatpush.msra.mxu0 %v477
        %931 = vmatpush.msra.mxu0 %v473
        %932 = vmatpush.msra.mxu0 %v469
        %933 = vmatpush.msra.mxu0 %v465
        %934 = vmatpush.msra.mxu0 %v461
        %935 = vmatpush.msra.mxu0 %v457
        %936 = vmatpush.msra.mxu0 %v453
        %937 = vmatpush.msra.mxu0 %v449
        %938 = vmatpush.msra.mxu0 %v445
        %939 = vmatpush.msra.mxu0 %v441
        %940 = vmatpush.msra.mxu0 %v437
        %941 = vmatmul.f32.gmra.mxu0 %v359
        %v942 = vpop.f32.mrf.mxu0
        %v943 = vadd.f32 %v920, %v942
        %944 = vmatmul.f32.gmra.mxu0 %v363
        %v945 = vpop.f32.mrf.mxu0
        %v946 = vadd.f32 %v923, %v945
        %947 = vdwg.mxu0
        %948 = vmatpush.msra.mxu0 %v561
        %949 = vmatpush.msra.mxu0 %v557
        %950 = vmatpush.msra.mxu0 %v553
        %951 = vmatpush.msra.mxu0 %v549
        %952 = vmatpush.msra.mxu0 %v545
        %953 = vmatpush.msra.mxu0 %v541
        %954 = vmatpush.msra.mxu0 %v537
        %955 = vmatpush.msra.mxu0 %v533
        %956 = vmatpush.msra.mxu0 %v529
        %957 = vmatpush.msra.mxu0 %v525
        %958 = vmatpush.msra.mxu0 %v521
        %959 = vmatpush.msra.mxu0 %v517
        %960 = vmatpush.msra.mxu0 %v513
        %961 = vmatpush.msra.mxu0 %v509
        %962 = vmatpush.msra.mxu0 %v505
        %963 = vmatpush.msra.mxu0 %v501
        %964 = vmatmul.f32.gmra.mxu0 %v360
        %v965 = vpop.f32.mrf.mxu0
        %v966 = vadd.f32 %v943, %v965
        %967 = vmatmul.f32.gmra.mxu0 %v364
        %v968 = vpop.f32.mrf.mxu0
        %v969 = vadd.f32 %v946, %v968
        %970 = vdwg.mxu0
        %971 = vmatpush.msra.mxu0 %v625
        %972 = vmatpush.msra.mxu0 %v621
        %973 = vmatpush.msra.mxu0 %v617
        %974 = vmatpush.msra.mxu0 %v613
        %975 = vmatpush.msra.mxu0 %v609
        %976 = vmatpush.msra.mxu0 %v605
        %977 = vmatpush.msra.mxu0 %v601
        %978 = vmatpush.msra.mxu0 %v597
        %979 = vmatpush.msra.mxu0 %v593
        %980 = vmatpush.msra.mxu0 %v589
        %981 = vmatpush.msra.mxu0 %v585
        %982 = vmatpush.msra.mxu0 %v581
        %983 = vmatpush.msra.mxu0 %v577
        %984 = vmatpush.msra.mxu0 %v573
        %985 = vmatpush.msra.mxu0 %v569
        %986 = vmatpush.msra.mxu0 %v565
        %987 = vmatmul.f32.gmra.mxu0 %v361
        %v988 = vpop.f32.mrf.mxu0
        %v989 = vadd.f32 %v966, %v988
        %990 = vmatmul.f32.gmra.mxu0 %v365
        %v991 = vpop.f32.mrf.mxu0
        %v992 = vadd.f32 %v969, %v991
        %993 = vdwg.mxu0
        %994 = vmatpush.xpose.msra.mxu0 0.0
        %995 = vmatpush.xpose.msra.mxu0 0.0
        %996 = vmatpush.xpose.msra.mxu0 0.0
        %997 = vmatpush.xpose.msra.mxu0 0.0
        %998 = vmatpush.xpose.msra.mxu0 0.0
        %999 = vmatpush.xpose.msra.mxu0 0.0
        %1000 = vmatpush.xpose.msra.mxu0 0.0
        %1001 = vmatpush.xpose.msra.mxu0 0.0
        %1002 = vmatpush.xpose.msra.mxu0 0.0
        %1003 = vmatpush.xpose.msra.mxu0 0.0
        %1004 = vmatpush.xpose.msra.mxu0 0.0
        %1005 = vmatpush.xpose.msra.mxu0 0.0
        %1006 = vmatpush.xpose.msra.mxu0 0.0
        %1007 = vmatpush.xpose.msra.mxu0 0.0
        %1008 = vmatpush.xpose.msra.mxu0 0.0
        %1009 = vmatpush.xpose.msra.mxu0 %v366
        %1010 = vmatmul.f32.gmra.mxu0 %v713
        %v1011 = vpop.f32.mrf.mxu0
        %v1012 = vadd.f32 0.0, %v1011
        %1013 = vmatmul.f32.gmra.mxu0 %v716
        %v1014 = vpop.f32.mrf.mxu0
        %v1015 = vadd.f32 0.0, %v1014
        %1016 = vdwg.mxu0
        %1017 = vmatpush.xpose.msra.mxu0 0.0
        %1018 = vmatpush.xpose.msra.mxu0 0.0
        %1019 = vmatpush.xpose.msra.mxu0 0.0
        %1020 = vmatpush.xpose.msra.mxu0 0.0
        %1021 = vmatpush.xpose.msra.mxu0 0.0
        %1022 = vmatpush.xpose.msra.mxu0 0.0
        %1023 = vmatpush.xpose.msra.mxu0 0.0
        %1024 = vmatpush.xpose.msra.mxu0 0.0
        %1025 = vmatpush.xpose.msra.mxu0 0.0
        %1026 = vmatpush.xpose.msra.mxu0 0.0
        %1027 = vmatpush.xpose.msra.mxu0 0.0
        %1028 = vmatpush.xpose.msra.mxu0 0.0
        %1029 = vmatpush.xpose.msra.mxu0 0.0
        %1030 = vmatpush.xpose.msra.mxu0 0.0
        %1031 = vmatpush.xpose.msra.mxu0 0.0
        %1032 = vmatpush.xpose.msra.mxu0 %v367
        %1033 = vmatmul.f32.gmra.mxu0 %v805
        %v1034 = vpop.f32.mrf.mxu0
        %v1035 = vadd.f32 %v1012, %v1034
        %1036 = vmatmul.f32.gmra.mxu0 %v808
        %v1037 = vpop.f32.mrf.mxu0
        %v1038 = vadd.f32 %v1015, %v1037
        %1039 = vdwg.mxu0
        %1040 = vmatpush.xpose.msra.mxu0 0.0
        %1041 = vmatpush.xpose.msra.mxu0 0.0
        %1042 = vmatpush.xpose.msra.mxu0 0.0
        %1043 = vmatpush.xpose.msra.mxu0 0.0
        %1044 = vmatpush.xpose.msra.mxu0 0.0
        %1045 = vmatpush.xpose.msra.mxu0 0.0
        %1046 = vmatpush.xpose.msra.mxu0 0.0
        %1047 = vmatpush.xpose.msra.mxu0 0.0
        %1048 = vmatpush.xpose.msra.mxu0 0.0
        %1049 = vmatpush.xpose.msra.mxu0 0.0
        %1050 = vmatpush.xpose.msra.mxu0 0.0
        %1051 = vmatpush.xpose.msra.mxu0 0.0
        %1052 = vmatpush.xpose.msra.mxu0 0.0
        %1053 = vmatpush.xpose.msra.mxu0 0.0
        %1054 = vmatpush.xpose.msra.mxu0 0.0
        %1055 = vmatpush.xpose.msra.mxu0 %v368
        %1056 = vmatmul.f32.gmra.mxu0 %v897
        %v1057 = vpop.f32.mrf.mxu0
        %v1058 = vadd.f32 %v1035, %v1057
        %1059 = vmatmul.f32.gmra.mxu0 %v900
        %v1060 = vpop.f32.mrf.mxu0
        %v1061 = vadd.f32 %v1038, %v1060
        %1062 = vdwg.mxu0
        %1063 = vmatpush.xpose.msra.mxu0 0.0
        %1064 = vmatpush.xpose.msra.mxu0 0.0
        %1065 = vmatpush.xpose.msra.mxu0 0.0
        %1066 = vmatpush.xpose.msra.mxu0 0.0
        %1067 = vmatpush.xpose.msra.mxu0 0.0
        %1068 = vmatpush.xpose.msra.mxu0 0.0
        %1069 = vmatpush.xpose.msra.mxu0 0.0
        %1070 = vmatpush.xpose.msra.mxu0 0.0
        %1071 = vmatpush.xpose.msra.mxu0 0.0
        %1072 = vmatpush.xpose.msra.mxu0 0.0
        %1073 = vmatpush.xpose.msra.mxu0 0.0
        %1074 = vmatpush.xpose.msra.mxu0 0.0
        %1075 = vmatpush.xpose.msra.mxu0 0.0
        %1076 = vmatpush.xpose.msra.mxu0 0.0
        %1077 = vmatpush.xpose.msra.mxu0 0.0
        %1078 = vmatpush.xpose.msra.mxu0 %v369
        %1079 = vmatmul.f32.gmra.mxu0 %v989
        %v1080 = vpop.f32.mrf.mxu0
        %v1081 = vadd.f32 %v1058, %v1080
        %1082 = vmatmul.f32.gmra.mxu0 %v992
        %v1083 = vpop.f32.mrf.mxu0
        %v1084 = vadd.f32 %v1061, %v1083
        %1085 = vdwg.mxu0
        %vm1086 = vcmask 64512
        %v1087 = vsel %vm1086, %v1081, -inf
        %1088 = vmax.xlane.f32.xlu0 %v1087
        %v1089 = vpop.xlane.xlu0 %1088
        %v1090 = vsel %vm1086, %v1084, -inf
        %1091 = vmax.xlane.f32.xlu0 %v1090
        %v1092 = vpop.xlane.xlu0 %1091
        %v1093 = vsub.f32 %v1081, %v1089
        %v1094 = vsub.f32 %v1084, %v1092
        %v1095 = vmul.f32 %v1093, 1.442695
        %v1096 = vpow.pop %v1095
        %v1097 = vmul.f32 %v1094, 1.442695
        %v1098 = vpow.pop %v1097
        %v1099 = vsel %vm1086, %v1096, 0.0
        %1100 = vadd.xlane.f32.xlu0 %v1099
        %v1101 = vpop.xlane.xlu0 %1100
        %v1102 = vsel %vm1086, %v1098, 0.0
        %1103 = vadd.xlane.f32.xlu0 %v1102
        %v1104 = vpop.xlane.xlu0 %1103
        %v1105 = vrcp.pop %v1101
        %v1106 = vmul.f32 %v1101, %v1105
        %v1107 = vsub.f32 1.0, %v1106
        %v1108 = vmul.f32 %v1105, %v1107
        %v1109 = vadd.f32 %v1105, %v1108
        %vm1110 = vweird.f32 %v1101
        %vm1111 = vweird.f32 %v1105
        %vm1112 = vmor %vm1110, %vm1111
        %v1113 = vsel %vm1112, %v1105, %v1109
        %v1114 = vand.u32 2147483647, %v1101
        %vm1115 = vcmp.eq.f32.partialorder %v1114, 8.507059e+37
        %v1116 = vand.u32 %v1101, 2147483648
        %v1117 = vor.u32 1.1754944e-38, %v1116
        %v1118 = vsel %vm1115, %v1117, %v1113
        %v1119 = vmul.f32 %v1096, %v1118
        %v1120 = vrcp.pop %v1104
        %v1121 = vmul.f32 %v1104, %v1120
        %v1122 = vsub.f32 1.0, %v1121
        %v1123 = vmul.f32 %v1120, %v1122
        %v1124 = vadd.f32 %v1120, %v1123
        %vm1125 = vweird.f32 %v1104
        %vm1126 = vweird.f32 %v1120
        %vm1127 = vmor %vm1125, %vm1126
        %v1128 = vsel %vm1127, %v1120, %v1124
        %v1129 = vand.u32 2147483647, %v1104
        %vm1130 = vcmp.eq.f32.partialorder %v1129, 8.507059e+37
        %v1131 = vand.u32 %v1104, 2147483648
        %v1132 = vor.u32 1.1754944e-38, %v1131
        %v1133 = vsel %vm1130, %v1132, %v1128
        %v1134 = vmul.f32 %v1098, %v1133
        %v1135 = vmax.f32 %v1087, %v1090
        %v1136 = vrot.slane %v1135, 4
        %v1137 = vmax.f32 %v1135, %v1136
        %v1138 = vrot.slane %v1137, 2
        %v1139 = vmax.f32 %v1137, %v1138
        %v1140 = vrot.slane %v1139, 1
        %v1141 = vmax.f32 %v1139, %v1140
        %v1142 = vsub.f32 %v1081, %v1141
        %v1143 = vsub.f32 %v1084, %v1141
        %v1144 = vmul.f32 %v1142, 1.442695
        %v1145 = vpow.pop %v1144
        %v1146 = vmul.f32 %v1143, 1.442695
        %v1147 = vpow.pop %v1146
        %v1148 = vsel %vm1086, %v1145, 0.0
        %v1149 = vsel %vm1086, %v1147, 0.0
        %v1150 = vadd.f32 %v1148, %v1149
        %v1151 = vrot.slane %v1150, 4
        %v1152 = vadd.f32 %v1150, %v1151
        %v1153 = vrot.slane %v1152, 2
        %v1154 = vadd.f32 %v1152, %v1153
        %v1155 = vrot.slane %v1154, 1
        %v1156 = vadd.f32 %v1154, %v1155
        %v1157 = vrcp.pop %v1156
        %v1158 = vmul.f32 %v1156, %v1157
        %v1159 = vsub.f32 1.0, %v1158
        %v1160 = vmul.f32 %v1157, %v1159
        %v1161 = vadd.f32 %v1157, %v1160
        %vm1162 = vweird.f32 %v1156
        %vm1163 = vweird.f32 %v1157
        %vm1164 = vmor %vm1162, %vm1163
        %v1165 = vsel %vm1164, %v1157, %v1161
        %v1166 = vand.u32 2147483647, %v1156
        %vm1167 = vcmp.eq.f32.partialorder %v1166, 8.507059e+37
        %v1168 = vand.u32 %v1156, 2147483648
        %v1169 = vor.u32 1.1754944e-38, %v1168
        %v1170 = vsel %vm1167, %v1169, %v1165
        %v1171 = vmul.f32 %v1145, %v1170
        %v1172 = vmul.f32 %v1147, %v1170
        %1173 = vxpose.xlu0.b32.start [1/16] %v1119, 128
        %1174 = vxpose.xlu0.b32.cont [2/16] %v1134, 128
        %1175 = vxpose.xlu0.b32.cont [3/16] 0.0, 128
        %1176 = vxpose.xlu0.b32.cont [4/16] 0.0, 128
        %1177 = vxpose.xlu0.b32.cont [5/16] 0.0, 128
        %1178 = vxpose.xlu0.b32.cont [6/16] 0.0, 128
        %1179 = vxpose.xlu0.b32.cont [7/16] 0.0, 128
        %1180 = vxpose.xlu0.b32.cont [8/16] 0.0, 128
        %1181 = vxpose.xlu0.b32.cont [9/16] 0.0, 128
        %1182 = vxpose.xlu0.b32.cont [10/16] 0.0, 128
        %1183 = vxpose.xlu0.b32.cont [11/16] 0.0, 128
        %1184 = vxpose.xlu0.b32.cont [12/16] 0.0, 128
        %1185 = vxpose.xlu0.b32.cont [13/16] 0.0, 128
        %1186 = vxpose.xlu0.b32.cont [14/16] 0.0, 128
        %1187 = vxpose.xlu0.b32.cont [15/16] 0.0, 128
        %1188 = vxpose.xlu0.b32.end [16/16] 0.0, 128
        %v1189 = vpop.trf.xlu0
        %v1190 = vpop.trf.xlu0
        %v1191 = vpop.trf.xlu0
        %v1192 = vpop.trf.xlu0
        %v1193 = vpop.trf.xlu0
        %v1194 = vpop.trf.xlu0
        %v1195 = vpop.trf.xlu0
        %v1196 = vpop.trf.xlu0
        %v1197 = vpop.trf.xlu0
        %v1198 = vpop.trf.xlu0
        %v1199 = vpop.trf.xlu0
        %v1200 = vpop.trf.xlu0
        %v1201 = vpop.trf.xlu0
        %v1202 = vpop.trf.xlu0
        %v1203 = vpop.trf.xlu0
        %v1204 = vpop.trf.xlu0
        %vm1205 = vcmask 130048
        %v1207 = vsel %vm1205, %v1189, 0
        %1209 = vmatpush.msra.mxu0 0.0
        %1210 = vmatpush.msra.mxu0 0.0
        %1211 = vmatpush.msra.mxu0 0.0
        %1212 = vmatpush.msra.mxu0 0.0
        %1213 = vmatpush.msra.mxu0 0.0
        %1214 = vmatpush.msra.mxu0 0.0
        %1215 = vmatpush.msra.mxu0 0.0
        %1216 = vmatpush.msra.mxu0 0.0
        %1217 = vmatpush.msra.mxu0 0.0
        %1218 = vmatpush.msra.mxu0 0.0
        %1219 = vmatpush.msra.mxu0 0.0
        %1220 = vmatpush.msra.mxu0 0.0
        %1221 = vmatpush.msra.mxu0 0.0
        %1222 = vmatpush.msra.mxu0 0.0
        %1223 = vmatpush.msra.mxu0 %v716
        %1224 = vmatpush.msra.mxu0 %v713
        %1225 = vmatmul.f32.gmra.mxu0 %v1207
        %v1226 = vpop.f32.mrf.mxu0
        %v1227 = vadd.f32 0.0, %v1226
        %1228 = vdwg.mxu0
        %1229 = vmatpush.msra.mxu0 0.0
        %1230 = vmatpush.msra.mxu0 0.0
        %1231 = vmatpush.msra.mxu0 0.0
        %1232 = vmatpush.msra.mxu0 0.0
        %1233 = vmatpush.msra.mxu0 0.0
        %1234 = vmatpush.msra.mxu0 0.0
        %1235 = vmatpush.msra.mxu0 0.0
        %1236 = vmatpush.msra.mxu0 0.0
        %1237 = vmatpush.msra.mxu0 0.0
        %1238 = vmatpush.msra.mxu0 0.0
        %1239 = vmatpush.msra.mxu0 0.0
        %1240 = vmatpush.msra.mxu0 0.0
        %1241 = vmatpush.msra.mxu0 0.0
        %1242 = vmatpush.msra.mxu0 0.0
        %1243 = vmatpush.msra.mxu0 %v808
        %1244 = vmatpush.msra.mxu0 %v805
        %1245 = vmatmul.f32.gmra.mxu0 %v1207
        %v1246 = vpop.f32.mrf.mxu0
        %v1247 = vadd.f32 0.0, %v1246
        %1248 = vdwg.mxu0
        %1249 = vmatpush.msra.mxu0 0.0
        %1250 = vmatpush.msra.mxu0 0.0
        %1251 = vmatpush.msra.mxu0 0.0
        %1252 = vmatpush.msra.mxu0 0.0
        %1253 = vmatpush.msra.mxu0 0.0
        %1254 = vmatpush.msra.mxu0 0.0
        %1255 = vmatpush.msra.mxu0 0.0
        %1256 = vmatpush.msra.mxu0 0.0
        %1257 = vmatpush.msra.mxu0 0.0
        %1258 = vmatpush.msra.mxu0 0.0
        %1259 = vmatpush.msra.mxu0 0.0
        %1260 = vmatpush.msra.mxu0 0.0
        %1261 = vmatpush.msra.mxu0 0.0
        %1262 = vmatpush.msra.mxu0 0.0
        %1263 = vmatpush.msra.mxu0 %v900
        %1264 = vmatpush.msra.mxu0 %v897
        %1265 = vmatmul.f32.gmra.mxu0 %v1207
        %v1266 = vpop.f32.mrf.mxu0
        %v1267 = vadd.f32 0.0, %v1266
        %1268 = vdwg.mxu0
        %1269 = vmatpush.msra.mxu0 0.0
        %1270 = vmatpush.msra.mxu0 0.0
        %1271 = vmatpush.msra.mxu0 0.0
        %1272 = vmatpush.msra.mxu0 0.0
        %1273 = vmatpush.msra.mxu0 0.0
        %1274 = vmatpush.msra.mxu0 0.0
        %1275 = vmatpush.msra.mxu0 0.0
        %1276 = vmatpush.msra.mxu0 0.0
        %1277 = vmatpush.msra.mxu0 0.0
        %1278 = vmatpush.msra.mxu0 0.0
        %1279 = vmatpush.msra.mxu0 0.0
        %1280 = vmatpush.msra.mxu0 0.0
        %1281 = vmatpush.msra.mxu0 0.0
        %1282 = vmatpush.msra.mxu0 0.0
        %1283 = vmatpush.msra.mxu0 %v992
        %1284 = vmatpush.msra.mxu0 %v989
        %1285 = vmatmul.f32.gmra.mxu0 %v1207
        %v1286 = vpop.f32.mrf.mxu0
        %v1287 = vadd.f32 0.0, %v1286
        %1288 = vdwg.mxu0
        %v1290 = vsel %vm1086, %v1171, 0
        %v1293 = vsel %vm1086, %v1172, 0
        %1295 = vmatpush.msra.mxu0 0.0
        %1296 = vmatpush.msra.mxu0 0.0
        %1297 = vmatpush.msra.mxu0 0.0
        %1298 = vmatpush.msra.mxu0 0.0
        %1299 = vmatpush.msra.mxu0 0.0
        %1300 = vmatpush.msra.mxu0 0.0
        %1301 = vmatpush.msra.mxu0 0.0
        %1302 = vmatpush.msra.mxu0 0.0
        %1303 = vmatpush.msra.mxu0 0.0
        %1304 = vmatpush.msra.mxu0 0.0
        %1305 = vmatpush.msra.mxu0 0.0
        %1306 = vmatpush.msra.mxu0 0.0
        %1307 = vmatpush.msra.mxu0 0.0
        %1308 = vmatpush.msra.mxu0 0.0
        %1309 = vmatpush.msra.mxu0 0.0
        %1310 = vmatpush.msra.mxu0 %v366
        %1311 = vmatmul.f32.gmra.mxu0 %v1290
        %v1312 = vpop.f32.mrf.mxu0
        %v1313 = vadd.f32 0.0, %v1312
        %1314 = vmatmul.f32.gmra.mxu0 %v1293
        %v1315 = vpop.f32.mrf.mxu0
        %v1316 = vadd.f32 0.0, %v1315
        %1317 = vdwg.mxu0
        %1318 = vmatpush.msra.mxu0 0.0
        %1319 = vmatpush.msra.mxu0 0.0
        %1320 = vmatpush.msra.mxu0 0.0
        %1321 = vmatpush.msra.mxu0 0.0
        %1322 = vmatpush.msra.mxu0 0.0
        %1323 = vmatpush.msra.mxu0 0.0
        %1324 = vmatpush.msra.mxu0 0.0
        %1325 = vmatpush.msra.mxu0 0.0
        %1326 = vmatpush.msra.mxu0 0.0
        %1327 = vmatpush.msra.mxu0 0.0
        %1328 = vmatpush.msra.mxu0 0.0
        %1329 = vmatpush.msra.mxu0 0.0
        %1330 = vmatpush.msra.mxu0 0.0
        %1331 = vmatpush.msra.mxu0 0.0
        %1332 = vmatpush.msra.mxu0 0.0
        %1333 = vmatpush.msra.mxu0 %v367
        %1334 = vmatmul.f32.gmra.mxu0 %v1290
        %v1335 = vpop.f32.mrf.mxu0
        %v1336 = vadd.f32 0.0, %v1335
        %1337 = vmatmul.f32.gmra.mxu0 %v1293
        %v1338 = vpop.f32.mrf.mxu0
        %v1339 = vadd.f32 0.0, %v1338
        %1340 = vdwg.mxu0
        %1341 = vmatpush.msra.mxu0 0.0
        %1342 = vmatpush.msra.mxu0 0.0
        %1343 = vmatpush.msra.mxu0 0.0
        %1344 = vmatpush.msra.mxu0 0.0
        %1345 = vmatpush.msra.mxu0 0.0
        %1346 = vmatpush.msra.mxu0 0.0
        %1347 = vmatpush.msra.mxu0 0.0
        %1348 = vmatpush.msra.mxu0 0.0
        %1349 = vmatpush.msra.mxu0 0.0
        %1350 = vmatpush.msra.mxu0 0.0
        %1351 = vmatpush.msra.mxu0 0.0
        %1352 = vmatpush.msra.mxu0 0.0
        %1353 = vmatpush.msra.mxu0 0.0
        %1354 = vmatpush.msra.mxu0 0.0
        %1355 = vmatpush.msra.mxu0 0.0
        %1356 = vmatpush.msra.mxu0 %v368
        %1357 = vmatmul.f32.gmra.mxu0 %v1290
        %v1358 = vpop.f32.mrf.mxu0
        %v1359 = vadd.f32 0.0, %v1358
        %1360 = vmatmul.f32.gmra.mxu0 %v1293
        %v1361 = vpop.f32.mrf.mxu0
        %v1362 = vadd.f32 0.0, %v1361
        %1363 = vdwg.mxu0
        %1364 = vmatpush.msra.mxu0 0.0
        %1365 = vmatpush.msra.mxu0 0.0
        %1366 = vmatpush.msra.mxu0 0.0
        %1367 = vmatpush.msra.mxu0 0.0
        %1368 = vmatpush.msra.mxu0 0.0
        %1369 = vmatpush.msra.mxu0 0.0
        %1370 = vmatpush.msra.mxu0 0.0
        %1371 = vmatpush.msra.mxu0 0.0
        %1372 = vmatpush.msra.mxu0 0.0
        %1373 = vmatpush.msra.mxu0 0.0
        %1374 = vmatpush.msra.mxu0 0.0
        %1375 = vmatpush.msra.mxu0 0.0
        %1376 = vmatpush.msra.mxu0 0.0
        %1377 = vmatpush.msra.mxu0 0.0
        %1378 = vmatpush.msra.mxu0 0.0
        %1379 = vmatpush.msra.mxu0 %v369
        %1380 = vmatmul.f32.gmra.mxu0 %v1290
        %v1381 = vpop.f32.mrf.mxu0
        %v1382 = vadd.f32 0.0, %v1381
        %1383 = vmatmul.f32.gmra.mxu0 %v1293
        %v1384 = vpop.f32.mrf.mxu0
        %v1385 = vadd.f32 0.0, %v1384
        %1386 = vdwg.mxu0
        %1387 = vst [vmem:[%s331] sm:$0xff] %v1313
        %1388 = vst [vmem:[%s331 + $0x8] sm:$0xff] %v1336
        %1389 = vst [vmem:[%s331 + $0x10] sm:$0xff] %v1359
        %1390 = vst [vmem:[%s331 + $0x18] sm:$0xff] %v1382
        %1391 = vst [vmem:[%s331 + $0x20] sm:$0xff] %v1316
        %1392 = vst [vmem:[%s331 + $0x28] sm:$0xff] %v1339
        %1393 = vst [vmem:[%s331 + $0x30] sm:$0xff] %v1362
        %1394 = vst [vmem:[%s331 + $0x38] sm:$0xff] %v1385
        %1395 = vst [vmem:[%s338] sm:$0xff] %v1227
        %1396 = vst [vmem:[%s338 + $0x8] sm:$0xff] %v1247
        %1397 = vst [vmem:[%s338 + $0x10] sm:$0xff] %v1267
        %1398 = vst [vmem:[%s338 + $0x18] sm:$0xff] %v1287
        %1399 = vst.msk [vmem:[%s357] sm:$0xff] %vm1086, %v1119
        %1400 = vst.msk [vmem:[%s357 + $0x8] sm:$0xff] %vm1086, %v1134
        %1401 = vxpose.xlu0.b32.start [1/16] %v1171, 128
        %1402 = vxpose.xlu0.b32.cont [2/16] %v1172, 128
        %1403 = vxpose.xlu0.b32.cont [3/16] 0.0, 128
        %1404 = vxpose.xlu0.b32.cont [4/16] 0.0, 128
        %1405 = vxpose.xlu0.b32.cont [5/16] 0.0, 128
        %1406 = vxpose.xlu0.b32.cont [6/16] 0.0, 128
        %1407 = vxpose.xlu0.b32.cont [7/16] 0.0, 128
        %1408 = vxpose.xlu0.b32.cont [8/16] 0.0, 128
        %1409 = vxpose.xlu0.b32.cont [9/16] 0.0, 128
        %1410 = vxpose.xlu0.b32.cont [10/16] 0.0, 128
        %1411 = vxpose.xlu0.b32.cont [11/16] 0.0, 128
        %1412 = vxpose.xlu0.b32.cont [12/16] 0.0, 128
        %1413 = vxpose.xlu0.b32.cont [13/16] 0.0, 128
        %1414 = vxpose.xlu0.b32.cont [14/16] 0.0, 128
        %1415 = vxpose.xlu0.b32.cont [15/16] 0.0, 128
        %1416 = vxpose.xlu0.b32.end [16/16] 0.0, 128
        %v1417 = vpop.trf.xlu0
        %v1418 = vpop.trf.xlu0
        %v1419 = vpop.trf.xlu0
        %v1420 = vpop.trf.xlu0
        %v1421 = vpop.trf.xlu0
        %v1422 = vpop.trf.xlu0
        %v1423 = vpop.trf.xlu0
        %v1424 = vpop.trf.xlu0
        %v1425 = vpop.trf.xlu0
        %v1426 = vpop.trf.xlu0
        %v1427 = vpop.trf.xlu0
        %v1428 = vpop.trf.xlu0
        %v1429 = vpop.trf.xlu0
        %v1430 = vpop.trf.xlu0
        %v1431 = vpop.trf.xlu0
        %v1432 = vpop.trf.xlu0
        %1433 = vst.msk [vmem:[%s352] sm:$0xff] %vm1205, %v1417
        %s1434 = sand.u32 %s111, 1
        %s1435 = scalar_lea.sflag [#allocation4], %s1434
        %s1436 = sand.u32 %s111, 1
        %s1437 = smul.addr %s1436, 64
        %s1438 = scalar_lea.vmem [#allocation8], %s1437
        %s1439 = sand.u32 %s30, 1
        %s1440 = scalar_lea.sflag [#allocation10], %s1439
        %s1441 = sand.u32 %s137, 1
        %s1442 = smul.addr %s1441, 32
        %s1443 = scalar_lea.vmem [#allocation9], %s1442
        %p1444 = scmp.lt.s32.totalorder %s30, 1
        %s1445 = scalar_select %p1444, %s30, 1
        %s1446 = smul.addr %s1445, 2
        %s1447 = smul.addr %s1446, 8
        %s1448 = scalar_lea.vmem %s5, %s1447
        %s1449 = sand.u32 %s30, 1
        %s1450 = scalar_lea.sflag [#allocation10], %s1449
        %s1451 = sand.u32 %s189, 1
        %s1452 = smul.addr %s1451, 8
        %s1453 = scalar_lea.vmem [#allocation11], %s1452
        // Predicated region
        $region45: #{tpu_custom_call.1} parent=31 // pred_check
          %p1454 = pneg %p121
        $region46: #{tpu_custom_call.1} parent=31 // pred_check_branch
          %1456 = sbr.rel (%p1454) target = $region48
        $region47: #{tpu_custom_call.1} parent=31 // pred_region
          %1458 = vsyncadd %s1435, 0
          %s1459 = smul.addr %s30, 8
          %s1460 = smul.addr %s1459, 8
          %s1461 = scalar_lea.hbm %s3, %s1460
          %s1462 = sshll.u32 %s1438, 4
          %s1463 = int_to_ptr.vmem [resolvable:$true] %s1462
          %s1464 = sshll.u32 %s1461, 4
          %s1465 = int_to_ptr.hbm [resolvable:$true] %s1464
          %1470 = dma.vmem_to_hbm [thread:$0]  %s1463, 1024, %s1465, %s1435, 512, 512, 32
        $region48: #{tpu_custom_call.1} parent=31 // pred_fallthru
          _
        // Predicated region
        $region49: #{tpu_custom_call.1} parent=31 // pred_check
          %p1471 = pneg %p147
        $region50: #{tpu_custom_call.1} parent=31 // pred_check_branch
          %1473 = sbr.rel (%p1471) target = $region52
        $region51: #{tpu_custom_call.1} parent=31 // pred_region
          %1475 = vsyncadd %s1440, 0
          %s1476 = smul.addr %s30, 4
          %s1477 = smul.addr %s1476, 8
          %s1478 = scalar_lea.hbm %s4, %s1477
          %s1480 = sshll.u32 %s1443, 4
          %s1481 = int_to_ptr.vmem [resolvable:$true] %s1480
          %s1482 = sshll.u32 %s1478, 4
          %s1483 = int_to_ptr.hbm [resolvable:$true] %s1482
          %1485 = dma.vmem_to_hbm [thread:$0]  %s1481, 512, %s1483, %s1440
        $region52: #{tpu_custom_call.1} parent=31 // pred_fallthru
          _
        // Predicated region
        $region53: #{tpu_custom_call.1} parent=31 // pred_check
          %p1486 = pneg %p173
        $region54: #{tpu_custom_call.1} parent=31 // pred_check_branch
          %1488 = sbr.rel (%p1486) target = $region56
        $region55: #{tpu_custom_call.1} parent=31 // pred_region
          _
        $region56: #{tpu_custom_call.1} parent=31 // pred_fallthru
          _
        // Predicated region
        $region57: #{tpu_custom_call.1} parent=31 // pred_check
          %p1489 = pneg %p199
        $region58: #{tpu_custom_call.1} parent=31 // pred_check_branch
          %1491 = sbr.rel (%p1489) target = $region60
        $region59: #{tpu_custom_call.1} parent=31 // pred_region
          %1493 = vsyncadd %s1450, 0
          %s1494 = smul.addr %s30, 8
          %s1495 = scalar_lea.hbm %s6, %s1494
          %s1497 = sshll.u32 %s1453, 4
          %s1498 = int_to_ptr.vmem [resolvable:$true] %s1497
          %s1499 = sshll.u32 %s1495, 4
          %s1500 = int_to_ptr.hbm [resolvable:$true] %s1499
          %1502 = dma.vmem_to_hbm [thread:$0]  %s1498, 128, %s1500, %s1450
        $region60: #{tpu_custom_call.1} parent=31 // pred_fallthru
          _
      $region32: #{tpu_custom_call.1} parent=5 // pred_fallthru
        _
      %p1503 = scmp.le.s32.totalorder 2, %s25
      // Predicated region
      $region61: #{tpu_custom_call.1} parent=5 // pred_check
        %p1504 = pneg %p1503
      $region62: #{tpu_custom_call.1} parent=5 // pred_check_branch
        %1506 = sbr.rel (%p1504) target = $region64
      $region63: #{tpu_custom_call.1} parent=5 // pred_region
        %s1507 = ssub.s32 %s25, 2
        // Predicated region
        $region65: #{tpu_custom_call.1} parent=63 // pred_check
          %p1508 = pneg %p127
        $region66: #{tpu_custom_call.1} parent=63 // pred_check_branch
          %1510 = sbr.rel (%p1508) target = $region68
        $region67: #{tpu_custom_call.1} parent=63 // pred_region
          %s1511 = sand.u32 %s112, 1
          %s1512 = scalar_lea.sflag [#allocation4], %s1511
          %s1513 = sand.u32 %s112, 1
          %s1514 = smul.addr %s1513, 64
          %s1515 = scalar_lea.vmem [#allocation8], %s1514
          %1517 = dma.done %s1512, 1024
        $region68: #{tpu_custom_call.1} parent=63 // pred_fallthru
          _
        // Predicated region
        $region69: #{tpu_custom_call.1} parent=63 // pred_check
          %p1518 = pneg %p153
        $region70: #{tpu_custom_call.1} parent=63 // pred_check_branch
          %1520 = sbr.rel (%p1518) target = $region72
        $region71: #{tpu_custom_call.1} parent=63 // pred_region
          %s1521 = sand.u32 %s31, 1
          %s1522 = scalar_lea.sflag [#allocation10], %s1521
          %s1523 = sand.u32 %s138, 1
          %s1524 = smul.addr %s1523, 32
          %s1525 = scalar_lea.vmem [#allocation9], %s1524
          %1527 = dma.done %s1522, 512
        $region72: #{tpu_custom_call.1} parent=63 // pred_fallthru
          _
        // Predicated region
        $region73: #{tpu_custom_call.1} parent=63 // pred_check
          %p1528 = pneg %p179
        $region74: #{tpu_custom_call.1} parent=63 // pred_check_branch
          %1530 = sbr.rel (%p1528) target = $region76
        $region75: #{tpu_custom_call.1} parent=63 // pred_region
          %p1531 = scmp.lt.s32.totalorder %s31, 1
          %s1532 = scalar_select %p1531, %s31, 1
          %s1533 = smul.addr %s1532, 2
          %s1534 = smul.addr %s1533, 8
          %s1535 = scalar_lea.vmem %s5, %s1534
        $region76: #{tpu_custom_call.1} parent=63 // pred_fallthru
          _
        // Predicated region
        $region77: #{tpu_custom_call.1} parent=63 // pred_check
          %p1536 = pneg %p205
        $region78: #{tpu_custom_call.1} parent=63 // pred_check_branch
          %1538 = sbr.rel (%p1536) target = $region80
        $region79: #{tpu_custom_call.1} parent=63 // pred_region
          %s1539 = sand.u32 %s31, 1
          %s1540 = scalar_lea.sflag [#allocation10], %s1539
          %s1541 = sand.u32 %s190, 1
          %s1542 = smul.addr %s1541, 8
          %s1543 = scalar_lea.vmem [#allocation11], %s1542
          %1545 = dma.done %s1540, 128
        $region80: #{tpu_custom_call.1} parent=63 // pred_fallthru
          _
      $region64: #{tpu_custom_call.1} parent=5 // pred_fallthru
        _
    $region6: #{tpu_custom_call.1} parent=1 // loop_footer
      %s29 = sadd.s32 1, %s25
    $region7: #{tpu_custom_call.1} parent=1 // loop_footer_branch
      %24 = sbr.rel target = $region3
    $region8: #{tpu_custom_call.1} parent=1 // loop_exit
      _
    %1546 = vsyncpa [#allocation3], 1
    %s1547 = scalar_lea.sflag [#allocation3], 1
    %1548 = vsyncpa %s1547, 1
    %1549 = vsyncpa [#allocation6], 1
    %s1550 = scalar_lea.sflag [#allocation6], 1
    %1551 = vsyncpa %s1550, 1
    %1552 = vsyncpa [#allocation4], 1
    %s1553 = scalar_lea.sflag [#allocation4], 1
    %1554 = vsyncpa %s1553, 1
    %1555 = vsyncpa [#allocation10], 1
    %s1556 = scalar_lea.sflag [#allocation10], 1
    %1557 = vsyncpa %s1556, 1

</llo_original>
